<compile_context>
chip_gen: v5e
topology: v5e:2x2
jax: 0.10.0
libtpu: 0.0.40
codegen_flags: <defaults>
</compile_context>

<pallas_src>
from functools import partial

import jax
import jax.numpy as jnp
from jax import lax
from jax.experimental import pallas as pl
from jax.experimental.pallas import tpu as pltpu


# Channel layout of the stacked input planes (each plane is (H+4, W), rows
# [0,1] and [H+2,H+3] are zero padding, flattened row-major):
#   0:3  res     3:6  img     6:9  ee=img_rain[0::2,0::2]
#   9:12 eo=[0::2,1::2]   12:15 oe=[1::2,0::2]   15:18 oo=[1::2,1::2]
_C_RES, _C_IMG, _C_EE, _C_EO, _C_OE, _C_OO = 0, 3, 6, 9, 12, 15
_NCH = 18

# stride-2 conv: original tap (ty,tx) (ordered ty*3+tx, matching the (F,27)
# weight flattening) -> (phase channel start, ky, kx), where the in-kernel
# flat shift is off = (ky+1)*W + (kx-1).
_RAIN_TAPS = (
    (_C_OO, 0, 0), (_C_OE, 0, 1), (_C_OO, 0, 1),
    (_C_EO, 1, 0), (_C_EE, 1, 1), (_C_EO, 1, 1),
    (_C_OO, 1, 0), (_C_OE, 1, 1), (_C_OO, 1, 1),
)


# ------------------------------- kernel ----------------------------------

def _stem_kernel(x_ref, xh_ref, mask_ref, w_ref, out_ref, *, width, t_q):
    W, tQ = width, t_q
    # main tile + halo -> (18, tQ + hB) bf16
    x = jnp.concatenate([x_ref[...], xh_ref[...]], axis=1)
    ml = mask_ref[0:1, :]                      # 0 where output col == 0
    mr = mask_ref[1:2, :]                      # 0 where output col == W-1

    # Memoize the 9 distinct lane-shifted views of the full 18-channel block.
    shifted = {}

    def tap(c0, ky, kx):
        off = (ky + 1) * W + (kx - 1)
        if off not in shifted:
            shifted[off] = x[:, off:off + tQ]           # (18, tQ) bf16
        s = shifted[off][c0:c0 + 3, :]                  # (3, tQ) bf16
        if kx == 0:        # reads column c-1 -> zero it where c == 0
            s = s * ml
        elif kx == 2:      # reads column c+1 -> zero it where c == W-1
            s = s * mr
        return s

    def conv(w, taps):
        p = jnp.concatenate([tap(*t) for t in taps], axis=0)      # (27, tQ)
        return jnp.dot(w, p, preferred_element_type=jnp.float32)  # (F, tQ) f32

    s1_taps = lambda c0: tuple((c0, ky, kx) for ky in range(3) for kx in range(3))
    img_down = conv(w_ref[0], _RAIN_TAPS)     # conv_stem0(img_rain), stride 2
    res_fea = conv(w_ref[1], s1_taps(_C_RES))  # conv_stem2(res)
    img_fea = conv(w_ref[2], s1_taps(_C_IMG))  # conv_stem3(img)

    gate = jax.nn.sigmoid(res_fea) + 1.0
    out_ref[...] = (img_down * gate + img_fea).astype(out_ref.dtype)


# ------------------------------- wrapper ----------------------------------

def _flatten_oihw(w):
    """(F, Cin, kh, kw) -> (F, kh*kw*Cin), column order (ky, kx, cin)."""
    F, Cin, kh, kw = w.shape
    return jnp.transpose(w, (0, 2, 3, 1)).reshape(F, kh * kw * Cin)


def _pick_tile(hw, hb, cap=8192):
    """Largest multiple of hb (<= cap) dividing hw; else a balanced round-up."""
    cap = max(cap, hb)
    best, t = 0, hb
    while t <= cap:
        if hw % t == 0:
            best = t
        t += hb
    if best == 0:
        n = -(-hw // cap)                 # number of tiles
        per = -(-hw // n)
        best = -(-per // hb) * hb
    return best


def stem_forward(img_rain, res, img, w0, w2, w3, kernel_size):
    """Pallas implementation of STEM.forward; NCHW in / NCHW out (bias=False)."""
    if kernel_size != 3:
        raise NotImplementedError("stem_forward: only kernel_size=3 is supported")
    B, Cin, Hr, Wr = img_rain.shape
    _, _, H, W = res.shape
    assert Cin == 3 and res.shape[1] == 3 and img.shape == res.shape
    assert Hr == 2 * H and Wr == 2 * W, "img_rain must be 2x the res/img resolution"
    F = w0.shape[0]

    # ---- stacked bf16 input planes: [res, img, ee, eo, oe, oo] ----
    ee = img_rain[:, :, 0::2, 0::2]
    eo = img_rain[:, :, 0::2, 1::2]
    oe = img_rain[:, :, 1::2, 0::2]
    oo = img_rain[:, :, 1::2, 1::2]
    planes = jnp.concatenate([res, img, ee, eo, oe, oo], axis=1).astype(jnp.bfloat16)
    planes = jnp.pad(planes, ((0, 0), (0, 0), (2, 2), (0, 0)))   # (B, 18, H+4, W)
    flat = planes.reshape(B, _NCH, (H + 4) * W)

    # ---- tiling: lane-dense spatial tiles + small lane-aligned halo blocks ----
    HW = H * W
    hB = max(128, int(pl.next_power_of_2(3 * W + 1)))            # halo >= 3W+1
    tQ = _pick_tile(HW, hB)
    nQ = -(-HW // tQ)
    HWpad = nQ * tQ
    L_in = HWpad + hB                                            # >= (H+3)*W + 1

    cur = flat.shape[-1]
    if L_in > cur:
        flat = jnp.pad(flat, ((0, 0), (0, 0), (0, L_in - cur)))
    else:
        flat = flat[:, :, :L_in]

    # ---- left/right column-boundary masks (1 everywhere except the wrap lanes)
    col = jnp.arange(HWpad, dtype=jnp.int32) % W
    masks = jnp.stack([col != 0, col != W - 1]).astype(jnp.bfloat16)   # (2, HWpad)

    # ---- per-conv (F, 27) weights, bf16: [conv_stem0, conv_stem2, conv_stem3]
    w_all = jnp.stack([_flatten_oihw(w0), _flatten_oihw(w2), _flatten_oihw(w3)])
    w_all = w_all.astype(jnp.bfloat16)                            # (3, F, 27)

    out = pl.pallas_call(
        partial(_stem_kernel, width=W, t_q=tQ),
        out_shape=jax.ShapeDtypeStruct((B, F, HWpad), jnp.float32),
        grid=(B, nQ),
        in_specs=[
            pl.BlockSpec((None, _NCH, tQ), lambda b, m: (b, 0, m)),          # main
            pl.BlockSpec((None, _NCH, hB),
                         lambda b, m: (b, 0, (m + 1) * (tQ // hB))),         # halo
            pl.BlockSpec((2, tQ), lambda b, m: (0, m)),                      # masks
            pl.BlockSpec((3, F, 27), lambda b, m: (0, 0, 0)),                # weights
        ],
        out_specs=pl.BlockSpec((None, F, tQ), lambda b, m: (b, 0, m)),
        compiler_params=pltpu.CompilerParams(
            dimension_semantics=("parallel", "parallel"),
            vmem_limit_bytes=32 * 1024 * 1024),
    )(flat, flat, masks, w_all)

    if HWpad != HW:
        out = out[:, :, :HW]
    return out.reshape(B, F, H, W)                                # NCHW


# ----- pure-JAX reference for correctness checking -----

def _conv_ref(x_nchw, w_oihw, stride, pad):
    return lax.conv_general_dilated(
        x_nchw, w_oihw, window_strides=(stride, stride),
        padding=[(pad, pad), (pad, pad)],
        dimension_numbers=("NCHW", "OIHW", "NCHW"),
        precision=lax.Precision.HIGHEST)


def stem_ref(img_rain, res, img, w0, w2, w3, k):
    p = k // 2
    img_down = _conv_ref(img_rain, w0, 2, p)
    res_fea = _conv_ref(res, w2, 1, p)
    rain_mask = jax.nn.sigmoid(res_fea)
    att_fea = img_down * rain_mask + img_down
    img_fea = _conv_ref(img, w3, 1, p)
    return att_fea + img_fea


if __name__ == "__main__":
    key = jax.random.PRNGKey(0)
    B, n_feat, ksize = 2, 8, 3
    H = W = 16                     # res / img spatial; img_rain is 2x (stride-2 stem)

    k1, k2, k3, k4, k5, k6 = jax.random.split(key, 6)
    img_rain = jax.random.normal(k1, (B, 3, 2 * H, 2 * W), jnp.float32)
    res = jax.random.normal(k2, (B, 3, H, W), jnp.float32)
    img = jax.random.normal(k3, (B, 3, H, W), jnp.float32)

    # Deterministic synthetic weights (Conv2d OIHW, bias=False as in the module).
    w0 = 0.1 * jax.random.normal(k4, (n_feat, 3, ksize, ksize), jnp.float32)
    w2 = 0.1 * jax.random.normal(k5, (n_feat, 3, ksize, ksize), jnp.float32)
    w3 = 0.1 * jax.random.normal(k6, (n_feat, 3, ksize, ksize), jnp.float32)

    out = stem_forward(img_rain, res, img, w0, w2, w3, ksize)
    out = jax.block_until_ready(out)
    assert out.shape == (B, n_feat, H, W)

    # Tight check: reference computed with the same bf16-quantized operands
    # (isolates kernel structure from the intentional bf16 operand cast).
    q = lambda a: a.astype(jnp.bfloat16).astype(jnp.float32)
    ref_q = stem_ref(q(img_rain), q(res), q(img), q(w0), q(w2), q(w3), ksize)
    assert jnp.allclose(out, ref_q, atol=2e-3, rtol=2e-3), "mismatch vs bf16-quantized ref"

    # Loose check: full-f32 reference (bounds the bf16-operand error).
    ref = stem_ref(img_rain, res, img, w0, w2, w3, ksize)
    assert jnp.allclose(out, ref, atol=5e-2, rtol=5e-2), "mismatch vs f32 reference"

    print("KERNEL_OK")
</pallas_src>

<mosaic_0001>
module attributes {stable_mosaic.version = 11 : i64} {
  func.func @_stem_kernel(%arg0: i32, %arg1: i32, %arg2: memref<1x18x256xbf16, #tpu.memory_space<vmem>>, %arg3: memref<1x18x128xbf16, #tpu.memory_space<vmem>>, %arg4: memref<2x256xbf16, #tpu.memory_space<vmem>>, %arg5: memref<3x8x27xbf16, #tpu.memory_space<vmem>>, %arg6: memref<1x8x256xf32, #tpu.memory_space<vmem>>) attributes {dimension_semantics = [#tpu.dimension_semantics<parallel>, #tpu.dimension_semantics<parallel>], iteration_bounds = array<i64: 2, 1>, scalar_prefetch = 0 : i64, scratch_operands = 0 : i64, tpu.core_type = #tpu.core_type<tc>, window_params = [{transform_indices = @transform_0, window_bounds = array<i64: 1, 18, 256>}, {transform_indices = @transform_1, window_bounds = array<i64: 1, 18, 128>}, {transform_indices = @transform_2, window_bounds = array<i64: 2, 256>}, {pipeline_mode = #tpu.pipeline_mode<synchronous>, transform_indices = @transform_3, window_bounds = array<i64: 3, 8, 27>}, {transform_indices = @transform_4, window_bounds = array<i64: 1, 8, 256>}]} {
    %c0 = arith.constant 0 : index
    %c0_0 = arith.constant 0 : index
    %c0_1 = arith.constant 0 : index
    %0 = vector.load %arg2[%c0, %c0_0, %c0_1] : memref<1x18x256xbf16, #tpu.memory_space<vmem>>, vector<1x18x256xbf16>
    %1 = vector.shape_cast %0 : vector<1x18x256xbf16> to vector<18x256xbf16>
    %c0_2 = arith.constant 0 : index
    %c0_3 = arith.constant 0 : index
    %c0_4 = arith.constant 0 : index
    %2 = vector.load %arg3[%c0_2, %c0_3, %c0_4] : memref<1x18x128xbf16, #tpu.memory_space<vmem>>, vector<1x18x128xbf16>
    %3 = vector.shape_cast %2 : vector<1x18x128xbf16> to vector<18x128xbf16>
    %4 = tpu.concatenate %1, %3 in 1 : vector<18x256xbf16>, vector<18x128xbf16> -> vector<18x384xbf16>
    %c0_5 = arith.constant 0 : index
    %c0_6 = arith.constant 0 : index
    %5 = vector.load %arg4[%c0_5, %c0_6] : memref<2x256xbf16, #tpu.memory_space<vmem>>, vector<1x256xbf16>
    %c1 = arith.constant 1 : index
    %c0_7 = arith.constant 0 : index
    %6 = vector.load %arg4[%c1, %c0_7] : memref<2x256xbf16, #tpu.memory_space<vmem>>, vector<1x256xbf16>
    %c0_8 = arith.constant 0 : index
    %c0_9 = arith.constant 0 : index
    %c0_10 = arith.constant 0 : index
    %7 = vector.load %arg5[%c0_8, %c0_9, %c0_10] : memref<3x8x27xbf16, #tpu.memory_space<vmem>>, vector<1x8x27xbf16>
    %8 = vector.shape_cast %7 : vector<1x8x27xbf16> to vector<8x27xbf16>
    %9 = vector.extract_strided_slice %4 {offsets = [0, 15], sizes = [18, 256], strides = [1, 1]} : vector<18x384xbf16> to vector<18x256xbf16>
    %10 = vector.extract_strided_slice %9 {offsets = [15, 0], sizes = [3, 256], strides = [1, 1]} : vector<18x256xbf16> to vector<3x256xbf16>
    %11 = vector.broadcast %5 : vector<1x256xbf16> to vector<3x256xbf16>
    %12 = arith.mulf %10, %11 : vector<3x256xbf16>
    %13 = vector.extract_strided_slice %4 {offsets = [0, 16], sizes = [18, 256], strides = [1, 1]} : vector<18x384xbf16> to vector<18x256xbf16>
    %14 = vector.extract_strided_slice %13 {offsets = [12, 0], sizes = [3, 256], strides = [1, 1]} : vector<18x256xbf16> to vector<3x256xbf16>
    %15 = vector.extract_strided_slice %13 {offsets = [15, 0], sizes = [3, 256], strides = [1, 1]} : vector<18x256xbf16> to vector<3x256xbf16>
    %16 = vector.extract_strided_slice %4 {offsets = [0, 31], sizes = [18, 256], strides = [1, 1]} : vector<18x384xbf16> to vector<18x256xbf16>
    %17 = vector.extract_strided_slice %16 {offsets = [9, 0], sizes = [3, 256], strides = [1, 1]} : vector<18x256xbf16> to vector<3x256xbf16>
    %18 = vector.broadcast %5 : vector<1x256xbf16> to vector<3x256xbf16>
    %19 = arith.mulf %17, %18 : vector<3x256xbf16>
    %20 = vector.extract_strided_slice %4 {offsets = [0, 32], sizes = [18, 256], strides = [1, 1]} : vector<18x384xbf16> to vector<18x256xbf16>
    %21 = vector.extract_strided_slice %20 {offsets = [6, 0], sizes = [3, 256], strides = [1, 1]} : vector<18x256xbf16> to vector<3x256xbf16>
    %22 = vector.extract_strided_slice %20 {offsets = [9, 0], sizes = [3, 256], strides = [1, 1]} : vector<18x256xbf16> to vector<3x256xbf16>
    %23 = vector.extract_strided_slice %16 {offsets = [15, 0], sizes = [3, 256], strides = [1, 1]} : vector<18x256xbf16> to vector<3x256xbf16>
    %24 = vector.broadcast %5 : vector<1x256xbf16> to vector<3x256xbf16>
    %25 = arith.mulf %23, %24 : vector<3x256xbf16>
    %26 = vector.extract_strided_slice %20 {offsets = [12, 0], sizes = [3, 256], strides = [1, 1]} : vector<18x256xbf16> to vector<3x256xbf16>
    %27 = vector.extract_strided_slice %20 {offsets = [15, 0], sizes = [3, 256], strides = [1, 1]} : vector<18x256xbf16> to vector<3x256xbf16>
    %28 = tpu.concatenate %12, %14, %15, %19, %21, %22, %25, %26, %27 in 0 : vector<3x256xbf16>, vector<3x256xbf16>, vector<3x256xbf16>, vector<3x256xbf16>, vector<3x256xbf16>, vector<3x256xbf16>, vector<3x256xbf16>, vector<3x256xbf16>, vector<3x256xbf16> -> vector<27x256xbf16>
    %cst = arith.constant dense<0.000000e+00> : vector<8x256xf32>
    %29 = tpu.matmul %8, %28, %cst {dimension_numbers = #tpu.dot_dimension_numbers<[1], [0], [0], [1], [0, 0, 1, 1], [], []>} : vector<8x27xbf16>, vector<27x256xbf16>, vector<8x256xf32> -> vector<8x256xf32>
    %c1_11 = arith.constant 1 : index
    %c0_12 = arith.constant 0 : index
    %c0_13 = arith.constant 0 : index
    %30 = vector.load %arg5[%c1_11, %c0_12, %c0_13] : memref<3x8x27xbf16, #tpu.memory_space<vmem>>, vector<1x8x27xbf16>
    %31 = vector.shape_cast %30 : vector<1x8x27xbf16> to vector<8x27xbf16>
    %32 = vector.extract_strided_slice %9 {offsets = [0, 0], sizes = [3, 256], strides = [1, 1]} : vector<18x256xbf16> to vector<3x256xbf16>
    %33 = vector.broadcast %5 : vector<1x256xbf16> to vector<3x256xbf16>
    %34 = arith.mulf %32, %33 : vector<3x256xbf16>
    %35 = vector.extract_strided_slice %13 {offsets = [0, 0], sizes = [3, 256], strides = [1, 1]} : vector<18x256xbf16> to vector<3x256xbf16>
    %36 = vector.extract_strided_slice %4 {offsets = [0, 17], sizes = [18, 256], strides = [1, 1]} : vector<18x384xbf16> to vector<18x256xbf16>
    %37 = vector.extract_strided_slice %36 {offsets = [0, 0], sizes = [3, 256], strides = [1, 1]} : vector<18x256xbf16> to vector<3x256xbf16>
    %38 = vector.broadcast %6 : vector<1x256xbf16> to vector<3x256xbf16>
    %39 = arith.mulf %37, %38 : vector<3x256xbf16>
    %40 = vector.extract_strided_slice %16 {offsets = [0, 0], sizes = [3, 256], strides = [1, 1]} : vector<18x256xbf16> to vector<3x256xbf16>
    %41 = vector.broadcast %5 : vector<1x256xbf16> to vector<3x256xbf16>
    %42 = arith.mulf %40, %41 : vector<3x256xbf16>
    %43 = vector.extract_strided_slice %20 {offsets = [0, 0], sizes = [3, 256], strides = [1, 1]} : vector<18x256xbf16> to vector<3x256xbf16>
    %44 = vector.extract_strided_slice %4 {offsets = [0, 33], sizes = [18, 256], strides = [1, 1]} : vector<18x384xbf16> to vector<18x256xbf16>
    %45 = vector.extract_strided_slice %44 {offsets = [0, 0], sizes = [3, 256], strides = [1, 1]} : vector<18x256xbf16> to vector<3x256xbf16>
    %46 = vector.broadcast %6 : vector<1x256xbf16> to vector<3x256xbf16>
    %47 = arith.mulf %45, %46 : vector<3x256xbf16>
    %48 = vector.extract_strided_slice %4 {offsets = [0, 47], sizes = [18, 256], strides = [1, 1]} : vector<18x384xbf16> to vector<18x256xbf16>
    %49 = vector.extract_strided_slice %48 {offsets = [0, 0], sizes = [3, 256], strides = [1, 1]} : vector<18x256xbf16> to vector<3x256xbf16>
    %50 = vector.broadcast %5 : vector<1x256xbf16> to vector<3x256xbf16>
    %51 = arith.mulf %49, %50 : vector<3x256xbf16>
    %52 = vector.extract_strided_slice %4 {offsets = [0, 48], sizes = [18, 256], strides = [1, 1]} : vector<18x384xbf16> to vector<18x256xbf16>
    %53 = vector.extract_strided_slice %52 {offsets = [0, 0], sizes = [3, 256], strides = [1, 1]} : vector<18x256xbf16> to vector<3x256xbf16>
    %54 = vector.extract_strided_slice %4 {offsets = [0, 49], sizes = [18, 256], strides = [1, 1]} : vector<18x384xbf16> to vector<18x256xbf16>
    %55 = vector.extract_strided_slice %54 {offsets = [0, 0], sizes = [3, 256], strides = [1, 1]} : vector<18x256xbf16> to vector<3x256xbf16>
    %56 = vector.broadcast %6 : vector<1x256xbf16> to vector<3x256xbf16>
    %57 = arith.mulf %55, %56 : vector<3x256xbf16>
    %58 = tpu.concatenate %34, %35, %39, %42, %43, %47, %51, %53, %57 in 0 : vector<3x256xbf16>, vector<3x256xbf16>, vector<3x256xbf16>, vector<3x256xbf16>, vector<3x256xbf16>, vector<3x256xbf16>, vector<3x256xbf16>, vector<3x256xbf16>, vector<3x256xbf16> -> vector<27x256xbf16>
    %cst_14 = arith.constant dense<0.000000e+00> : vector<8x256xf32>
    %59 = tpu.matmul %31, %58, %cst_14 {dimension_numbers = #tpu.dot_dimension_numbers<[1], [0], [0], [1], [0, 0, 1, 1], [], []>} : vector<8x27xbf16>, vector<27x256xbf16>, vector<8x256xf32> -> vector<8x256xf32>
    %c2 = arith.constant 2 : index
    %c0_15 = arith.constant 0 : index
    %c0_16 = arith.constant 0 : index
    %60 = vector.load %arg5[%c2, %c0_15, %c0_16] : memref<3x8x27xbf16, #tpu.memory_space<vmem>>, vector<1x8x27xbf16>
    %61 = vector.shape_cast %60 : vector<1x8x27xbf16> to vector<8x27xbf16>
    %62 = vector.extract_strided_slice %9 {offsets = [3, 0], sizes = [3, 256], strides = [1, 1]} : vector<18x256xbf16> to vector<3x256xbf16>
    %63 = vector.broadcast %5 : vector<1x256xbf16> to vector<3x256xbf16>
    %64 = arith.mulf %62, %63 : vector<3x256xbf16>
    %65 = vector.extract_strided_slice %13 {offsets = [3, 0], sizes = [3, 256], strides = [1, 1]} : vector<18x256xbf16> to vector<3x256xbf16>
    %66 = vector.extract_strided_slice %36 {offsets = [3, 0], sizes = [3, 256], strides = [1, 1]} : vector<18x256xbf16> to vector<3x256xbf16>
    %67 = vector.broadcast %6 : vector<1x256xbf16> to vector<3x256xbf16>
    %68 = arith.mulf %66, %67 : vector<3x256xbf16>
    %69 = vector.extract_strided_slice %16 {offsets = [3, 0], sizes = [3, 256], strides = [1, 1]} : vector<18x256xbf16> to vector<3x256xbf16>
    %70 = vector.broadcast %5 : vector<1x256xbf16> to vector<3x256xbf16>
    %71 = arith.mulf %69, %70 : vector<3x256xbf16>
    %72 = vector.extract_strided_slice %20 {offsets = [3, 0], sizes = [3, 256], strides = [1, 1]} : vector<18x256xbf16> to vector<3x256xbf16>
    %73 = vector.extract_strided_slice %44 {offsets = [3, 0], sizes = [3, 256], strides = [1, 1]} : vector<18x256xbf16> to vector<3x256xbf16>
    %74 = vector.broadcast %6 : vector<1x256xbf16> to vector<3x256xbf16>
    %75 = arith.mulf %73, %74 : vector<3x256xbf16>
    %76 = vector.extract_strided_slice %48 {offsets = [3, 0], sizes = [3, 256], strides = [1, 1]} : vector<18x256xbf16> to vector<3x256xbf16>
    %77 = vector.broadcast %5 : vector<1x256xbf16> to vector<3x256xbf16>
    %78 = arith.mulf %76, %77 : vector<3x256xbf16>
    %79 = vector.extract_strided_slice %52 {offsets = [3, 0], sizes = [3, 256], strides = [1, 1]} : vector<18x256xbf16> to vector<3x256xbf16>
    %80 = vector.extract_strided_slice %54 {offsets = [3, 0], sizes = [3, 256], strides = [1, 1]} : vector<18x256xbf16> to vector<3x256xbf16>
    %81 = vector.broadcast %6 : vector<1x256xbf16> to vector<3x256xbf16>
    %82 = arith.mulf %80, %81 : vector<3x256xbf16>
    %83 = tpu.concatenate %64, %65, %68, %71, %72, %75, %78, %79, %82 in 0 : vector<3x256xbf16>, vector<3x256xbf16>, vector<3x256xbf16>, vector<3x256xbf16>, vector<3x256xbf16>, vector<3x256xbf16>, vector<3x256xbf16>, vector<3x256xbf16>, vector<3x256xbf16> -> vector<27x256xbf16>
    %cst_17 = arith.constant dense<0.000000e+00> : vector<8x256xf32>
    %84 = tpu.matmul %61, %83, %cst_17 {dimension_numbers = #tpu.dot_dimension_numbers<[1], [0], [0], [1], [0, 0, 1, 1], [], []>} : vector<8x27xbf16>, vector<27x256xbf16>, vector<8x256xf32> -> vector<8x256xf32>
    %85 = arith.negf %59 : vector<8x256xf32>
    %86 = math.exp %85 : vector<8x256xf32>
    %cst_18 = arith.constant 1.000000e+00 : f32
    %87 = vector.broadcast %cst_18 : f32 to vector<8x256xf32>
    %88 = arith.addf %87, %86 : vector<8x256xf32>
    %89 = arith.divf %87, %88 : vector<8x256xf32>
    %cst_19 = arith.constant 1.000000e+00 : f32
    %90 = vector.broadcast %cst_19 : f32 to vector<8x256xf32>
    %91 = arith.addf %89, %90 : vector<8x256xf32>
    %92 = arith.mulf %29, %91 : vector<8x256xf32>
    %93 = arith.addf %92, %84 : vector<8x256xf32>
    %c0_20 = arith.constant 0 : index
    %c0_21 = arith.constant 0 : index
    %c0_22 = arith.constant 0 : index
    %94 = vector.load %arg6[%c0_20, %c0_21, %c0_22] : memref<1x8x256xf32, #tpu.memory_space<vmem>>, vector<1x8x256xf32>
    %95 = vector.shape_cast %94 : vector<1x8x256xf32> to vector<8x256xf32>
    %96 = vector.shape_cast %93 : vector<8x256xf32> to vector<1x8x256xf32>
    tpu.vector_store %arg6[%c0_20, %c0_21, %c0_22], %96 {strides = array<i32>} : memref<1x8x256xf32, #tpu.memory_space<vmem>>, vector<1x8x256xf32>,
    return
  }
  func.func @transform_0(%arg0: i32, %arg1: i32) -> (i32, i32, i32) {
    %c0_i32 = arith.constant 0 : i32
    %c0_i32_0 = arith.constant 0 : i32
    return %arg0, %c0_i32, %arg1 : i32, i32, i32
  }
  func.func @transform_1(%arg0: i32, %arg1: i32) -> (i32, i32, i32) {
    %c1_i32 = arith.constant 1 : i32
    %0 = arith.addi %arg1, %c1_i32 : i32
    %c2_i32 = arith.constant 2 : i32
    %1 = arith.muli %0, %c2_i32 : i32
    %c0_i32 = arith.constant 0 : i32
    %c0_i32_0 = arith.constant 0 : i32
    return %arg0, %c0_i32, %1 : i32, i32, i32
  }
  func.func @transform_2(%arg0: i32, %arg1: i32) -> (i32, i32) {
    %c0_i32 = arith.constant 0 : i32
    %c0_i32_0 = arith.constant 0 : i32
    return %c0_i32, %arg1 : i32, i32
  }
  func.func @transform_3(%arg0: i32, %arg1: i32) -> (i32, i32, i32) {
    %c0_i32 = arith.constant 0 : i32
    %c0_i32_0 = arith.constant 0 : i32
    %c0_i32_1 = arith.constant 0 : i32
    %c0_i32_2 = arith.constant 0 : i32
    return %c0_i32, %c0_i32_0, %c0_i32_1 : i32, i32, i32
  }
  func.func @transform_4(%arg0: i32, %arg1: i32) -> (i32, i32, i32) {
    %c0_i32 = arith.constant 0 : i32
    %c0_i32_0 = arith.constant 0 : i32
    return %arg0, %c0_i32, %arg1 : i32, i32, i32
  }
}

</mosaic_0001>

<llo_original>
// kernel: tpu_custom_call.1
$region0: #{tpu_custom_call.1}
  #allocation0 [shape = 'u32[]', space=smem, size = 0x4, offset = 0x4, fixed_abs, tag = 'smem constant byte address 0x4 - core index']
  #allocation1 [shape = 'u32[72,128]{1,0:T(1,128)}', space=vmem, size = 0x9000, scoped, tag = 'internal scratch']
  %s0 = inlined_call_operand.vmem [shape: bf16[2,18,384], index: 0, kind: input, shape index: {}]
  %s1 = inlined_call_operand.vmem [shape: bf16[2,18,384], index: 1, kind: input, shape index: {}]
  %s2 = inlined_call_operand.vmem [shape: bf16[2,256], index: 2, kind: input, shape index: {}]
  %s3 = inlined_call_operand.vmem [shape: bf16[3,8,27], index: 3, kind: input, shape index: {}]
  %s4 = inlined_call_operand.hbm [shape: f32[2,8,256], index: 4, kind: output, shape index: {}]
  %s5 = sld [smem:[#allocation0]]
  $region156: #{tpu_custom_call.1} parent=0
    _
  %s7 = ssub.s32 1, %s5
  %s8 = scalar_select 0, %s7, %s5
  $region1: #{tpu_custom_call.1} parent=0
    #allocation2 [shape = 'u8[24576]{0}', space=vmem, size = 0x6000, scoped, tag = 'input window, operand 0']
    #allocation3 [shape = 'u8[12288]{0}', space=vmem, size = 0x3000, scoped, tag = 'input window, operand 1']
    #allocation4 [shape = 'u8[16384]{0}', space=vmem, size = 0x4000, scoped, tag = 'output window, operand 0']
    #allocation5 [shape = 's32[2]{0}', space=sflag, size = 0x8, scoped, tag = 'scoped memory for tpu_custom_call.1']
    %9 = vsyncpa [#allocation5], 0
    %s10 = scalar_lea.sflag [#allocation5], 1
    %11 = vsyncpa %s10, 0
    loop: start=0, step=1, limit=4
    $region2: #{tpu_custom_call.1} parent=1 // loop_pre_header
      _
    $region3: #{tpu_custom_call.1} parent=1 // loop_header
      %s13 = sphi 0, %s17
      %p14 = scmp.ge.s32.totalorder %s13, 4
      %s20 = sphi 0, %s32
      %s21 = sphi 0, %s28
      %s22 = sphi 0, %s20
      %s23 = sphi 0, %s21
      %s24 = sphi 0, %s22
      %s25 = sphi 0, %s23
      %s37 = sphi 0, %s39
      %s40 = sphi 0, %s37
      %s41 = sphi 0, %s40
      %s57 = sphi 0, %s41
      %s69 = sphi 0, %s71
      %s72 = sphi 0, %s69
      %s73 = sphi 0, %s72
      %s89 = sphi 0, %s73
      %s95 = sphi 0, %s97
      %s98 = sphi 0, %s95
      %s99 = sphi 0, %s98
      %s115 = sphi 0, %s99
      %s119 = sphi 0, %s119
      %s121 = sphi 0, %s119
      %s122 = sphi 0, %s121
      %s136 = sphi 0, %s122
      %s144 = sphi 0, %s146
      %s147 = sphi 0, %s144
      %s148 = sphi 0, %s147
      %s164 = sphi 0, %s148
    $region4: #{tpu_custom_call.1} parent=1 // loop_header_branch
      %16 = sbr.rel (%p14) target = $region8
    $region5: #{tpu_custom_call.1} parent=1 // loop_body
      %s18 = ssub.s32 %s13, 1
      %s19 = ssub.s32 %s13, 2
      %s26 = sadd.s32 1, %s21
      %p27 = scmp.ge.s32.totalorder %s26, 1
      %s28 = scalar_select %p27, 0, %s26
      %s29 = sadd.s32 1, %s20
      %s30 = scalar_select %p27, %s29, %s20
      %p31 = scmp.ge.s32.totalorder %s30, 2
      %s32 = scalar_select %p31, 0, %s30
      %s33 = ssub.s32 %s20, %s32
      %s34 = ssub.s32 %s21, %s28
      %s35 = sor.u32 %s33, %s34
      %p36 = scmp.eq.s32.totalorder %s35, 0
      %s38 = sadd.s32 %s37, 1
      %s39 = scalar_select %p36, %s37, %s38
      %p42 = pneg %p36
      %p43 = scmp.eq.s32.totalorder %s13, 1
      %p44 = por %p42, %p43
      %p45 = scmp.ne.s32.totalorder %s37, %s40
      %p46 = scmp.eq.s32.totalorder %s13, 0
      %p47 = por %p45, %p46
      %p48 = scmp.ne.s32.totalorder %s37, %s40
      %p49 = scmp.eq.s32.totalorder %s18, 1
      %p50 = por %p48, %p49
      %p51 = scmp.ne.s32.totalorder %s40, %s41
      %p52 = scmp.eq.s32.totalorder %s18, 0
      %p53 = por %p51, %p52
      %p54 = scmp.ne.s32.totalorder %s40, %s41
      %p55 = scmp.eq.s32.totalorder %s19, 1
      %p56 = por %p54, %p55
      %p58 = scmp.ne.s32.totalorder %s41, %s57
      %p59 = scmp.eq.s32.totalorder %s19, 0
      %p60 = por %p58, %p59
      %s61 = sadd.s32 %s21, 1
      %s62 = smul.u32 %s61, 2
      %s63 = sadd.s32 %s28, 1
      %s64 = smul.u32 %s63, 2
      %s65 = ssub.s32 %s20, %s32
      %s66 = ssub.s32 %s62, %s64
      %s67 = sor.u32 %s65, %s66
      %p68 = scmp.eq.s32.totalorder %s67, 0
      %s70 = sadd.s32 %s69, 1
      %s71 = scalar_select %p68, %s69, %s70
      %p74 = pneg %p68
      %p75 = scmp.eq.s32.totalorder %s13, 1
      %p76 = por %p74, %p75
      %p77 = scmp.ne.s32.totalorder %s69, %s72
      %p78 = scmp.eq.s32.totalorder %s13, 0
      %p79 = por %p77, %p78
      %p80 = scmp.ne.s32.totalorder %s69, %s72
      %p81 = scmp.eq.s32.totalorder %s18, 1
      %p82 = por %p80, %p81
      %p83 = scmp.ne.s32.totalorder %s72, %s73
      %p84 = scmp.eq.s32.totalorder %s18, 0
      %p85 = por %p83, %p84
      %p86 = scmp.ne.s32.totalorder %s72, %s73
      %p87 = scmp.eq.s32.totalorder %s19, 1
      %p88 = por %p86, %p87
      %p90 = scmp.ne.s32.totalorder %s73, %s89
      %p91 = scmp.eq.s32.totalorder %s19, 0
      %p92 = por %p90, %p91
      %s93 = ssub.s32 %s21, %s28
      %p94 = scmp.eq.s32.totalorder %s93, 0
      %s96 = sadd.s32 %s95, 1
      %s97 = scalar_select %p94, %s95, %s96
      %p100 = pneg %p94
      %p101 = scmp.eq.s32.totalorder %s13, 1
      %p102 = por %p100, %p101
      %p103 = scmp.ne.s32.totalorder %s95, %s98
      %p104 = scmp.eq.s32.totalorder %s13, 0
      %p105 = por %p103, %p104
      %p106 = scmp.ne.s32.totalorder %s95, %s98
      %p107 = scmp.eq.s32.totalorder %s18, 1
      %p108 = por %p106, %p107
      %p109 = scmp.ne.s32.totalorder %s98, %s99
      %p110 = scmp.eq.s32.totalorder %s18, 0
      %p111 = por %p109, %p110
      %p112 = scmp.ne.s32.totalorder %s98, %s99
      %p113 = scmp.eq.s32.totalorder %s19, 1
      %p114 = por %p112, %p113
      %p116 = scmp.ne.s32.totalorder %s99, %s115
      %p117 = scmp.eq.s32.totalorder %s19, 0
      %p118 = por %p116, %p117
      %s120 = sadd.s32 %s119, 1
      %p123 = scmp.eq.s32.totalorder %s13, 1
      %p124 = scmp.ne.s32.totalorder %s119, %s121
      %p125 = scmp.eq.s32.totalorder %s13, 0
      %p126 = por %p124, %p125
      %p127 = scmp.ne.s32.totalorder %s119, %s121
      %p128 = scmp.eq.s32.totalorder %s18, 1
      %p129 = por %p127, %p128
      %p130 = scmp.ne.s32.totalorder %s121, %s122
      %p131 = scmp.eq.s32.totalorder %s18, 0
      %p132 = por %p130, %p131
      %p133 = scmp.ne.s32.totalorder %s121, %s122
      %p134 = scmp.eq.s32.totalorder %s19, 1
      %p135 = por %p133, %p134
      %p137 = scmp.ne.s32.totalorder %s122, %s136
      %p138 = scmp.eq.s32.totalorder %s19, 0
      %p139 = por %p137, %p138
      %s140 = ssub.s32 %s20, %s32
      %s141 = ssub.s32 %s21, %s28
      %s142 = sor.u32 %s140, %s141
      %p143 = scmp.eq.s32.totalorder %s142, 0
      %s145 = sadd.s32 %s144, 1
      %s146 = scalar_select %p143, %s144, %s145
      %p149 = pneg %p143
      %p150 = scmp.eq.s32.totalorder %s13, 1
      %p151 = por %p149, %p150
      %p152 = scmp.ne.s32.totalorder %s144, %s147
      %p153 = scmp.eq.s32.totalorder %s13, 0
      %p154 = por %p152, %p153
      %p155 = scmp.ne.s32.totalorder %s144, %s147
      %p156 = scmp.eq.s32.totalorder %s18, 1
      %p157 = por %p155, %p156
      %p158 = scmp.ne.s32.totalorder %s147, %s148
      %p159 = scmp.eq.s32.totalorder %s18, 0
      %p160 = por %p158, %p159
      %p161 = scmp.ne.s32.totalorder %s147, %s148
      %p162 = scmp.eq.s32.totalorder %s19, 1
      %p163 = por %p161, %p162
      %p165 = scmp.ne.s32.totalorder %s148, %s164
      %p166 = scmp.eq.s32.totalorder %s19, 0
      %p167 = por %p165, %p166
      %p168 = scmp.le.s32.totalorder 1, %s13
      %p169 = scmp.lt.s32.totalorder %s13, 3
      %p170 = pnand %p168, %p169
      %p171 = pneg %p170
      // Predicated region
      $region9: #{tpu_custom_call.1} parent=5 // pred_check
        _
      $region10: #{tpu_custom_call.1} parent=5 // pred_check_branch
        %173 = sbr.rel (%p170) target = $region12
      $region11: #{tpu_custom_call.1} parent=5 // pred_region
        %s174 = ssub.s32 %s13, 1
        // Predicated region
        $region13: #{tpu_custom_call.1} parent=11 // pred_check
          %p175 = pneg %p111
        $region14: #{tpu_custom_call.1} parent=11 // pred_check_branch
          %177 = sbr.rel (%p175) target = $region16
        $region15: #{tpu_custom_call.1} parent=11 // pred_region
          %s178 = smul.u32 2, %s23
          %p179 = scmp.lt.s32.totalorder %s178, 1
          %s180 = scalar_select %p179, %s178, 1
          %s181 = scalar_lea.vmem %s2, %s180
          %s182 = smul.u32 2, %s23
        $region16: #{tpu_custom_call.1} parent=11 // pred_fallthru
          _
        // Predicated region
        $region17: #{tpu_custom_call.1} parent=11 // pred_check
          %p183 = pneg %p132
        $region18: #{tpu_custom_call.1} parent=11 // pred_check_branch
          %185 = sbr.rel (%p183) target = $region20
        $region19: #{tpu_custom_call.1} parent=11 // pred_region
          _
        $region20: #{tpu_custom_call.1} parent=11 // pred_fallthru
          _
      $region12: #{tpu_custom_call.1} parent=5 // pred_fallthru
        _
      %p186 = scmp.lt.s32.totalorder %s13, 2
      // Predicated region
      $region21: #{tpu_custom_call.1} parent=5 // pred_check
        %p187 = pneg %p186
      $region22: #{tpu_custom_call.1} parent=5 // pred_check_branch
        %189 = sbr.rel (%p187) target = $region24
      $region23: #{tpu_custom_call.1} parent=5 // pred_region
        // Predicated region
        $region25: #{tpu_custom_call.1} parent=23 // pred_check
          %p190 = pneg %p47
        $region26: #{tpu_custom_call.1} parent=23 // pred_check_branch
          %192 = sbr.rel (%p190) target = $region28
        $region27: #{tpu_custom_call.1} parent=23 // pred_region
          %s193 = sand.u32 %s37, 1
          %s194 = sand.u32 %s37, 1
          %s195 = smul.addr %s194, 24
          %s196 = scalar_lea.vmem [#allocation2], %s195
          %s197 = smul.u32 2, %s21
          %s198 = ssub.s32 3, %s197
          %p199 = scmp.lt.s32.totalorder %s198, 2
          %s200 = scalar_select %p199, %s198, 2
          %s201 = smul.u32 12, %s200
          %p202 = scmp.ne.s32.totalorder 0, %s201
          %s203 = smul.addr %s20, 9
          %s204 = sadd.s32 %s197, %s203
          %s205 = smul.addr %s204, 4
          %s206 = scalar_lea.vmem %s0, %s205
          %s207 = smul.u32 %s200, 4
          // Predicated region
          $region29: #{tpu_custom_call.1} parent=27 // pred_check
            %p208 = pneg %p202
          $region30: #{tpu_custom_call.1} parent=27 // pred_check_branch
            %210 = sbr.rel (%p208) target = $region32
          $region31: #{tpu_custom_call.1} parent=27 // pred_region
            %p211 = scmp.lt.u32.totalorder %s207, 8
            %p212 = pneg %p211
            // Predicated region
            $region33: #{tpu_custom_call.1} parent=31 // pred_check
              _
            $region34: #{tpu_custom_call.1} parent=31 // pred_check_branch
              %214 = sbr.rel (%p211) target = $region36
            $region35: #{tpu_custom_call.1} parent=31 // pred_region
              %s234 = sand.u32 %s207, 7
              %p235 = scmp.eq.s32.totalorder %s234, 0
              // Predicated region
              $region48: #{tpu_custom_call.1} parent=35 // pred_check
                %p236 = pneg %p235
              $region49: #{tpu_custom_call.1} parent=35 // pred_check_branch
                %238 = sbr.rel (%p236) target = $region51
              $region50: #{tpu_custom_call.1} parent=35 // pred_region
                %s239 = sshrl.u32 %s207, 3
                %s240 = sdiv.u32.pop %s239, 12
                %s241 = srem.u32.pop %s239, 12
                // While loop
                $region52: #{tpu_custom_call.1} parent=50 // loop_pre_header
                  _
                $region53: #{tpu_custom_call.1} parent=50 // loop_header
                  %s243 = sphi 0, %s245
                  %p244 = scmp.ge.s32.totalorder %s243, %s240
                  %s248 = sphi 0, %s325
                  %s249 = sphi %s206, %s328
                  %s250 = sphi %s196, %s329
                $region54: #{tpu_custom_call.1} parent=50 // loop_header_branch
                  %247 = sbr.rel (%p244) target = $region58
                $region55: #{tpu_custom_call.1} parent=50 // loop_body
                  %v251 = vld [vmem:[%s249] sm:$0xff]
                  %252 = vst [vmem:[%s250] sm:$0xff] %v251
                  %v253 = vld [vmem:[%s249 + $0x8] sm:$0xff]
                  %254 = vst [vmem:[%s250 + $0x8] sm:$0xff] %v253
                  %v255 = vld [vmem:[%s249 + $0x10] sm:$0xff]
                  %256 = vst [vmem:[%s250 + $0x10] sm:$0xff] %v255
                  %v257 = vld [vmem:[%s249 + $0x18] sm:$0xff]
                  %258 = vst [vmem:[%s250 + $0x18] sm:$0xff] %v257
                  %v259 = vld [vmem:[%s249 + $0x20] sm:$0xff]
                  %260 = vst [vmem:[%s250 + $0x20] sm:$0xff] %v259
                  %v261 = vld [vmem:[%s249 + $0x28] sm:$0xff]
                  %262 = vst [vmem:[%s250 + $0x28] sm:$0xff] %v261
                  %v263 = vld [vmem:[%s249 + $0x30] sm:$0xff]
                  %264 = vst [vmem:[%s250 + $0x30] sm:$0xff] %v263
                  %v265 = vld [vmem:[%s249 + $0x38] sm:$0xff]
                  %266 = vst [vmem:[%s250 + $0x38] sm:$0xff] %v265
                  %v267 = vld [vmem:[%s249 + $0x40] sm:$0xff]
                  %268 = vst [vmem:[%s250 + $0x40] sm:$0xff] %v267
                  %v269 = vld [vmem:[%s249 + $0x48] sm:$0xff]
                  %270 = vst [vmem:[%s250 + $0x48] sm:$0xff] %v269
                  %v271 = vld [vmem:[%s249 + $0x50] sm:$0xff]
                  %272 = vst [vmem:[%s250 + $0x50] sm:$0xff] %v271
                  %v273 = vld [vmem:[%s249 + $0x58] sm:$0xff]
                  %274 = vst [vmem:[%s250 + $0x58] sm:$0xff] %v273
                  %v275 = vld [vmem:[%s249 + $0xc] sm:$0xff]
                  %276 = vst [vmem:[%s250 + $0x8] sm:$0xff] %v275
                  %v277 = vld [vmem:[%s249 + $0x14] sm:$0xff]
                  %278 = vst [vmem:[%s250 + $0x10] sm:$0xff] %v277
                  %v279 = vld [vmem:[%s249 + $0x1c] sm:$0xff]
                  %280 = vst [vmem:[%s250 + $0x18] sm:$0xff] %v279
                  %v281 = vld [vmem:[%s249 + $0x24] sm:$0xff]
                  %282 = vst [vmem:[%s250 + $0x20] sm:$0xff] %v281
                  %v283 = vld [vmem:[%s249 + $0x2c] sm:$0xff]
                  %284 = vst [vmem:[%s250 + $0x28] sm:$0xff] %v283
                  %v285 = vld [vmem:[%s249 + $0x34] sm:$0xff]
                  %286 = vst [vmem:[%s250 + $0x30] sm:$0xff] %v285
                  %v287 = vld [vmem:[%s249 + $0x3c] sm:$0xff]
                  %288 = vst [vmem:[%s250 + $0x38] sm:$0xff] %v287
                  %v289 = vld [vmem:[%s249 + $0x44] sm:$0xff]
                  %290 = vst [vmem:[%s250 + $0x40] sm:$0xff] %v289
                  %v291 = vld [vmem:[%s249 + $0x4c] sm:$0xff]
                  %292 = vst [vmem:[%s250 + $0x48] sm:$0xff] %v291
                  %v293 = vld [vmem:[%s249 + $0x54] sm:$0xff]
                  %294 = vst [vmem:[%s250 + $0x50] sm:$0xff] %v293
                  %v295 = vld [vmem:[%s249 + $0x5c] sm:$0xff]
                  %296 = vst [vmem:[%s250 + $0x58] sm:$0xff] %v295
                  %v297 = vld [vmem:[%s249 + $0x64] sm:$0xff]
                  %298 = vst [vmem:[%s250 + $0x60] sm:$0xff] %v297
                  %v299 = vld [vmem:[%s249 + $0x18] sm:$0xff]
                  %300 = vst [vmem:[%s250 + $0x10] sm:$0xff] %v299
                  %v301 = vld [vmem:[%s249 + $0x20] sm:$0xff]
                  %302 = vst [vmem:[%s250 + $0x18] sm:$0xff] %v301
                  %v303 = vld [vmem:[%s249 + $0x28] sm:$0xff]
                  %304 = vst [vmem:[%s250 + $0x20] sm:$0xff] %v303
                  %v305 = vld [vmem:[%s249 + $0x30] sm:$0xff]
                  %306 = vst [vmem:[%s250 + $0x28] sm:$0xff] %v305
                  %v307 = vld [vmem:[%s249 + $0x38] sm:$0xff]
                  %308 = vst [vmem:[%s250 + $0x30] sm:$0xff] %v307
                  %v309 = vld [vmem:[%s249 + $0x40] sm:$0xff]
                  %310 = vst [vmem:[%s250 + $0x38] sm:$0xff] %v309
                  %v311 = vld [vmem:[%s249 + $0x48] sm:$0xff]
                  %312 = vst [vmem:[%s250 + $0x40] sm:$0xff] %v311
                  %v313 = vld [vmem:[%s249 + $0x50] sm:$0xff]
                  %314 = vst [vmem:[%s250 + $0x48] sm:$0xff] %v313
                  %v315 = vld [vmem:[%s249 + $0x58] sm:$0xff]
                  %316 = vst [vmem:[%s250 + $0x50] sm:$0xff] %v315
                  %v317 = vld [vmem:[%s249 + $0x60] sm:$0xff]
                  %318 = vst [vmem:[%s250 + $0x58] sm:$0xff] %v317
                  %v319 = vld [vmem:[%s249 + $0x68] sm:$0xff]
                  %320 = vst [vmem:[%s250 + $0x60] sm:$0xff] %v319
                  %v321 = vld [vmem:[%s249 + $0x70] sm:$0xff]
                  %322 = vst [vmem:[%s250 + $0x68] sm:$0xff] %v321
                  %s323 = sadd.s32 1, %s248
                  %p324 = scmp.ge.s32.totalorder %s323, %s240
                  %s325 = scalar_select %p324, 0, %s323
                  %s326 = smul.u32 %s325, 96
                  %s327 = smul.u32 %s325, 96
                  %s328 = scalar_lea.vmem %s206, %s326
                  %s329 = scalar_lea.vmem %s196, %s327 [#allocation2]
                $region56: #{tpu_custom_call.1} parent=50 // loop_footer
                  %s245 = sadd.s32 %s243, 1
                $region57: #{tpu_custom_call.1} parent=50 // loop_footer_branch
                  %242 = sbr.rel target = $region53
                $region58: #{tpu_custom_call.1} parent=50 // loop_exit
                  _
                %s330 = sdiv.u32.pop %s239, 12
                %s331 = srem.u32.pop %s239, 12
                %s332 = smul.u32 %s330, 12
                %s333 = smul.u32 8, %s332
                %s334 = scalar_lea.vmem %s206, %s333
                %s335 = smul.u32 8, %s332
                %s336 = scalar_lea.vmem %s196, %s335 [#allocation2]
                // While loop
                $region59: #{tpu_custom_call.1} parent=50 // loop_pre_header
                  _
                $region60: #{tpu_custom_call.1} parent=50 // loop_header
                  %s338 = sphi 0, %s340
                  %p339 = scmp.ge.s32.totalorder %s338, %s331
                  %s343 = sphi 0, %s354
                  %s344 = sphi %s334, %s357
                  %s345 = sphi %s336, %s358
                $region61: #{tpu_custom_call.1} parent=50 // loop_header_branch
                  %342 = sbr.rel (%p339) target = $region65
                $region62: #{tpu_custom_call.1} parent=50 // loop_body
                  %v346 = vld [vmem:[%s344] sm:$0xff]
                  %347 = vst [vmem:[%s345] sm:$0xff] %v346
                  %v348 = vld [vmem:[%s344 + $0xc] sm:$0xff]
                  %349 = vst [vmem:[%s345 + $0x8] sm:$0xff] %v348
                  %v350 = vld [vmem:[%s344 + $0x18] sm:$0xff]
                  %351 = vst [vmem:[%s345 + $0x10] sm:$0xff] %v350
                  %s352 = sadd.s32 1, %s343
                  %p353 = scmp.ge.s32.totalorder %s352, %s331
                  %s354 = scalar_select %p353, 0, %s352
                  %s355 = smul.u32 %s354, 8
                  %s356 = smul.u32 %s354, 8
                  %s357 = scalar_lea.vmem %s334, %s355
                  %s358 = scalar_lea.vmem %s336, %s356 [#allocation2]
                $region63: #{tpu_custom_call.1} parent=50 // loop_footer
                  %s340 = sadd.s32 %s338, 1
                $region64: #{tpu_custom_call.1} parent=50 // loop_footer_branch
                  %337 = sbr.rel target = $region60
                $region65: #{tpu_custom_call.1} parent=50 // loop_exit
                  _
              $region51: #{tpu_custom_call.1} parent=35 // pred_fallthru
                _
              %p359 = pneg %p235
              // Predicated region
              $region66: #{tpu_custom_call.1} parent=35 // pred_check
                _
              $region67: #{tpu_custom_call.1} parent=35 // pred_check_branch
                %361 = sbr.rel (%p235) target = $region69
              $region68: #{tpu_custom_call.1} parent=35 // pred_region
                %s362 = sand.u32 %s207, 7
                %s363 = ssub.s32 %s207, %s362
                %s364 = scalar_lea.vmem %s206, %s363
                %s365 = ssub.s32 %s207, %s362
                %s366 = scalar_lea.vmem %s196, %s365 [#allocation2]
                %s367 = sshrl.u32 %s207, 3
                %s368 = sdiv.u32.pop %s367, 12
                %s369 = srem.u32.pop %s367, 12
                // While loop
                $region70: #{tpu_custom_call.1} parent=68 // loop_pre_header
                  _
                $region71: #{tpu_custom_call.1} parent=68 // loop_header
                  %s371 = sphi 0, %s373
                  %p372 = scmp.ge.s32.totalorder %s371, %s368
                  %s376 = sphi 0, %s453
                  %s377 = sphi %s206, %s456
                  %s378 = sphi %s196, %s457
                $region72: #{tpu_custom_call.1} parent=68 // loop_header_branch
                  %375 = sbr.rel (%p372) target = $region76
                $region73: #{tpu_custom_call.1} parent=68 // loop_body
                  %v379 = vld [vmem:[%s377] sm:$0xff]
                  %380 = vst [vmem:[%s378] sm:$0xff] %v379
                  %v381 = vld [vmem:[%s377 + $0x8] sm:$0xff]
                  %382 = vst [vmem:[%s378 + $0x8] sm:$0xff] %v381
                  %v383 = vld [vmem:[%s377 + $0x10] sm:$0xff]
                  %384 = vst [vmem:[%s378 + $0x10] sm:$0xff] %v383
                  %v385 = vld [vmem:[%s377 + $0x18] sm:$0xff]
                  %386 = vst [vmem:[%s378 + $0x18] sm:$0xff] %v385
                  %v387 = vld [vmem:[%s377 + $0x20] sm:$0xff]
                  %388 = vst [vmem:[%s378 + $0x20] sm:$0xff] %v387
                  %v389 = vld [vmem:[%s377 + $0x28] sm:$0xff]
                  %390 = vst [vmem:[%s378 + $0x28] sm:$0xff] %v389
                  %v391 = vld [vmem:[%s377 + $0x30] sm:$0xff]
                  %392 = vst [vmem:[%s378 + $0x30] sm:$0xff] %v391
                  %v393 = vld [vmem:[%s377 + $0x38] sm:$0xff]
                  %394 = vst [vmem:[%s378 + $0x38] sm:$0xff] %v393
                  %v395 = vld [vmem:[%s377 + $0x40] sm:$0xff]
                  %396 = vst [vmem:[%s378 + $0x40] sm:$0xff] %v395
                  %v397 = vld [vmem:[%s377 + $0x48] sm:$0xff]
                  %398 = vst [vmem:[%s378 + $0x48] sm:$0xff] %v397
                  %v399 = vld [vmem:[%s377 + $0x50] sm:$0xff]
                  %400 = vst [vmem:[%s378 + $0x50] sm:$0xff] %v399
                  %v401 = vld [vmem:[%s377 + $0x58] sm:$0xff]
                  %402 = vst [vmem:[%s378 + $0x58] sm:$0xff] %v401
                  %v403 = vld [vmem:[%s377 + $0xc] sm:$0xff]
                  %404 = vst [vmem:[%s378 + $0x8] sm:$0xff] %v403
                  %v405 = vld [vmem:[%s377 + $0x14] sm:$0xff]
                  %406 = vst [vmem:[%s378 + $0x10] sm:$0xff] %v405
                  %v407 = vld [vmem:[%s377 + $0x1c] sm:$0xff]
                  %408 = vst [vmem:[%s378 + $0x18] sm:$0xff] %v407
                  %v409 = vld [vmem:[%s377 + $0x24] sm:$0xff]
                  %410 = vst [vmem:[%s378 + $0x20] sm:$0xff] %v409
                  %v411 = vld [vmem:[%s377 + $0x2c] sm:$0xff]
                  %412 = vst [vmem:[%s378 + $0x28] sm:$0xff] %v411
                  %v413 = vld [vmem:[%s377 + $0x34] sm:$0xff]
                  %414 = vst [vmem:[%s378 + $0x30] sm:$0xff] %v413
                  %v415 = vld [vmem:[%s377 + $0x3c] sm:$0xff]
                  %416 = vst [vmem:[%s378 + $0x38] sm:$0xff] %v415
                  %v417 = vld [vmem:[%s377 + $0x44] sm:$0xff]
                  %418 = vst [vmem:[%s378 + $0x40] sm:$0xff] %v417
                  %v419 = vld [vmem:[%s377 + $0x4c] sm:$0xff]
                  %420 = vst [vmem:[%s378 + $0x48] sm:$0xff] %v419
                  %v421 = vld [vmem:[%s377 + $0x54] sm:$0xff]
                  %422 = vst [vmem:[%s378 + $0x50] sm:$0xff] %v421
                  %v423 = vld [vmem:[%s377 + $0x5c] sm:$0xff]
                  %424 = vst [vmem:[%s378 + $0x58] sm:$0xff] %v423
                  %v425 = vld [vmem:[%s377 + $0x64] sm:$0xff]
                  %426 = vst [vmem:[%s378 + $0x60] sm:$0xff] %v425
                  %v427 = vld [vmem:[%s377 + $0x18] sm:$0xff]
                  %428 = vst [vmem:[%s378 + $0x10] sm:$0xff] %v427
                  %v429 = vld [vmem:[%s377 + $0x20] sm:$0xff]
                  %430 = vst [vmem:[%s378 + $0x18] sm:$0xff] %v429
                  %v431 = vld [vmem:[%s377 + $0x28] sm:$0xff]
                  %432 = vst [vmem:[%s378 + $0x20] sm:$0xff] %v431
                  %v433 = vld [vmem:[%s377 + $0x30] sm:$0xff]
                  %434 = vst [vmem:[%s378 + $0x28] sm:$0xff] %v433
                  %v435 = vld [vmem:[%s377 + $0x38] sm:$0xff]
                  %436 = vst [vmem:[%s378 + $0x30] sm:$0xff] %v435
                  %v437 = vld [vmem:[%s377 + $0x40] sm:$0xff]
                  %438 = vst [vmem:[%s378 + $0x38] sm:$0xff] %v437
                  %v439 = vld [vmem:[%s377 + $0x48] sm:$0xff]
                  %440 = vst [vmem:[%s378 + $0x40] sm:$0xff] %v439
                  %v441 = vld [vmem:[%s377 + $0x50] sm:$0xff]
                  %442 = vst [vmem:[%s378 + $0x48] sm:$0xff] %v441
                  %v443 = vld [vmem:[%s377 + $0x58] sm:$0xff]
                  %444 = vst [vmem:[%s378 + $0x50] sm:$0xff] %v443
                  %v445 = vld [vmem:[%s377 + $0x60] sm:$0xff]
                  %446 = vst [vmem:[%s378 + $0x58] sm:$0xff] %v445
                  %v447 = vld [vmem:[%s377 + $0x68] sm:$0xff]
                  %448 = vst [vmem:[%s378 + $0x60] sm:$0xff] %v447
                  %v449 = vld [vmem:[%s377 + $0x70] sm:$0xff]
                  %450 = vst [vmem:[%s378 + $0x68] sm:$0xff] %v449
                  %s451 = sadd.s32 1, %s376
                  %p452 = scmp.ge.s32.totalorder %s451, %s368
                  %s453 = scalar_select %p452, 0, %s451
                  %s454 = smul.u32 %s453, 96
                  %s455 = smul.u32 %s453, 96
                  %s456 = scalar_lea.vmem %s206, %s454
                  %s457 = scalar_lea.vmem %s196, %s455 [#allocation2]
                $region74: #{tpu_custom_call.1} parent=68 // loop_footer
                  %s373 = sadd.s32 %s371, 1
                $region75: #{tpu_custom_call.1} parent=68 // loop_footer_branch
                  %370 = sbr.rel target = $region71
                $region76: #{tpu_custom_call.1} parent=68 // loop_exit
                  _
                %s458 = sdiv.u32.pop %s367, 12
                %s459 = srem.u32.pop %s367, 12
                %s460 = smul.u32 %s458, 12
                %s461 = smul.u32 8, %s460
                %s462 = scalar_lea.vmem %s206, %s461
                %s463 = smul.u32 8, %s460
                %s464 = scalar_lea.vmem %s196, %s463 [#allocation2]
                // While loop
                $region77: #{tpu_custom_call.1} parent=68 // loop_pre_header
                  _
                $region78: #{tpu_custom_call.1} parent=68 // loop_header
                  %s466 = sphi 0, %s468
                  %p467 = scmp.ge.s32.totalorder %s466, %s459
                  %s471 = sphi 0, %s482
                  %s472 = sphi %s462, %s485
                  %s473 = sphi %s464, %s486
                $region79: #{tpu_custom_call.1} parent=68 // loop_header_branch
                  %470 = sbr.rel (%p467) target = $region83
                $region80: #{tpu_custom_call.1} parent=68 // loop_body
                  %v474 = vld [vmem:[%s472] sm:$0xff]
                  %475 = vst [vmem:[%s473] sm:$0xff] %v474
                  %v476 = vld [vmem:[%s472 + $0xc] sm:$0xff]
                  %477 = vst [vmem:[%s473 + $0x8] sm:$0xff] %v476
                  %v478 = vld [vmem:[%s472 + $0x18] sm:$0xff]
                  %479 = vst [vmem:[%s473 + $0x10] sm:$0xff] %v478
                  %s480 = sadd.s32 1, %s471
                  %p481 = scmp.ge.s32.totalorder %s480, %s459
                  %s482 = scalar_select %p481, 0, %s480
                  %s483 = smul.u32 %s482, 8
                  %s484 = smul.u32 %s482, 8
                  %s485 = scalar_lea.vmem %s462, %s483
                  %s486 = scalar_lea.vmem %s464, %s484 [#allocation2]
                $region81: #{tpu_custom_call.1} parent=68 // loop_footer
                  %s468 = sadd.s32 %s466, 1
                $region82: #{tpu_custom_call.1} parent=68 // loop_footer_branch
                  %465 = sbr.rel target = $region78
                $region83: #{tpu_custom_call.1} parent=68 // loop_exit
                  _
                %s487 = sshll.u32 1, %s362
                %s488 = ssub.s32 %s487, 1
                loop: start=0, step=1, limit=1
                $region84: #{tpu_custom_call.1} parent=68 // loop_pre_header
                  _
                $region85: #{tpu_custom_call.1} parent=68 // loop_header
                  %s490 = sphi 0, %s494
                  %p491 = scmp.ge.s32.totalorder %s490, 1
                  %s495 = sphi %s364, %s364
                  %s496 = sphi %s366, %s366
                $region86: #{tpu_custom_call.1} parent=68 // loop_header_branch
                  %493 = sbr.rel (%p491) target = $region90
                $region87: #{tpu_custom_call.1} parent=68 // loop_body
                  %v497 = vld [vmem:[%s495] sm:%s488]
                  %498 = vst [vmem:[%s496] sm:%s488] %v497
                  %v499 = vld [vmem:[%s495 + $0xc] sm:%s488]
                  %500 = vst [vmem:[%s496 + $0x8] sm:%s488] %v499
                  %v501 = vld [vmem:[%s495 + $0x18] sm:%s488]
                  %502 = vst [vmem:[%s496 + $0x10] sm:%s488] %v501
                $region88: #{tpu_custom_call.1} parent=68 // loop_footer
                  %s494 = sadd.s32 1, %s490
                $region89: #{tpu_custom_call.1} parent=68 // loop_footer_branch
                  %489 = sbr.rel target = $region85
                $region90: #{tpu_custom_call.1} parent=68 // loop_exit
                  _
              $region69: #{tpu_custom_call.1} parent=35 // pred_fallthru
                _
            $region36: #{tpu_custom_call.1} parent=31 // pred_fallthru
              _
            // Predicated region
            $region37: #{tpu_custom_call.1} parent=31 // pred_check
              %p215 = pneg %p211
            $region38: #{tpu_custom_call.1} parent=31 // pred_check_branch
              %217 = sbr.rel (%p215) target = $region40
            $region39: #{tpu_custom_call.1} parent=31 // pred_region
              %s218 = sshll.u32 1, %s207
              %s219 = ssub.s32 %s218, 1
              loop: start=0, step=1, limit=1
              $region41: #{tpu_custom_call.1} parent=39 // loop_pre_header
                _
              $region42: #{tpu_custom_call.1} parent=39 // loop_header
                %s221 = sphi 0, %s225
                %p222 = scmp.ge.s32.totalorder %s221, 1
                %s226 = sphi %s206, %s206
                %s227 = sphi %s196, %s196
              $region43: #{tpu_custom_call.1} parent=39 // loop_header_branch
                %224 = sbr.rel (%p222) target = $region47
              $region44: #{tpu_custom_call.1} parent=39 // loop_body
                %v228 = vld [vmem:[%s226] sm:%s219]
                %229 = vst [vmem:[%s227] sm:%s219] %v228
                %v230 = vld [vmem:[%s226 + $0xc] sm:%s219]
                %231 = vst [vmem:[%s227 + $0x8] sm:%s219] %v230
                %v232 = vld [vmem:[%s226 + $0x18] sm:%s219]
                %233 = vst [vmem:[%s227 + $0x10] sm:%s219] %v232
              $region45: #{tpu_custom_call.1} parent=39 // loop_footer
                %s225 = sadd.s32 1, %s221
              $region46: #{tpu_custom_call.1} parent=39 // loop_footer_branch
                %220 = sbr.rel target = $region42
              $region47: #{tpu_custom_call.1} parent=39 // loop_exit
                _
            $region40: #{tpu_custom_call.1} parent=31 // pred_fallthru
              _
          $region32: #{tpu_custom_call.1} parent=27 // pred_fallthru
            _
          %503 = vnop
        $region28: #{tpu_custom_call.1} parent=23 // pred_fallthru
          _
        // Predicated region
        $region91: #{tpu_custom_call.1} parent=23 // pred_check
          %p504 = pneg %p79
        $region92: #{tpu_custom_call.1} parent=23 // pred_check_branch
          %506 = sbr.rel (%p504) target = $region94
        $region93: #{tpu_custom_call.1} parent=23 // pred_region
          %s507 = sand.u32 %s69, 1
          %s508 = sand.u32 %s69, 1
          %s509 = smul.addr %s508, 12
          %s510 = scalar_lea.vmem [#allocation3], %s509
          %s511 = sadd.s32 %s21, 1
          %s512 = smul.u32 %s511, 2
          %s513 = smul.addr %s20, 9
          %s514 = sadd.s32 %s512, %s513
          %s515 = smul.addr %s514, 4
          %s516 = scalar_lea.vmem %s1, %s515
          // Predicated region
          $region95: #{tpu_custom_call.1} parent=93 // pred_check
            _
          $region96: #{tpu_custom_call.1} parent=93 // pred_check_branch
            %518 = sbr.rel (0) target = $region98
          $region97: #{tpu_custom_call.1} parent=93 // pred_region
            // Predicated region
            $region99: #{tpu_custom_call.1} parent=97 // pred_check
              _
            $region100: #{tpu_custom_call.1} parent=97 // pred_check_branch
              %520 = sbr.rel target = $region102
            $region101: #{tpu_custom_call.1} parent=97 // pred_region
              // Predicated region
              $region114: #{tpu_custom_call.1} parent=101 // pred_check
                _
              $region115: #{tpu_custom_call.1} parent=101 // pred_check_branch
                %540 = sbr.rel (0) target = $region117
              $region116: #{tpu_custom_call.1} parent=101 // pred_region
                loop: start=0, step=1, limit=1
                $region118: #{tpu_custom_call.1} parent=116 // loop_pre_header
                  _
                $region119: #{tpu_custom_call.1} parent=116 // loop_header
                  %s542 = sphi 0, %s546
                  %p543 = scmp.ge.s32.totalorder %s542, 1
                  %s547 = sphi %s516, %s516
                  %s548 = sphi %s510, %s510
                $region120: #{tpu_custom_call.1} parent=116 // loop_header_branch
                  %545 = sbr.rel (%p543) target = $region124
                $region121: #{tpu_custom_call.1} parent=116 // loop_body
                  _
                $region122: #{tpu_custom_call.1} parent=116 // loop_footer
                  %s546 = sadd.s32 1, %s542
                $region123: #{tpu_custom_call.1} parent=116 // loop_footer_branch
                  %541 = sbr.rel target = $region119
                $region124: #{tpu_custom_call.1} parent=116 // loop_exit
                  _
                %s550 = ssub.s32 16, 1
                loop: start=0, step=1, limit=1
                $region125: #{tpu_custom_call.1} parent=116 // loop_pre_header
                  _
                $region126: #{tpu_custom_call.1} parent=116 // loop_header
                  %s552 = sphi 0, %s556
                  %p553 = scmp.ge.s32.totalorder %s552, 1
                  %s557 = sphi %s516, %s516
                  %s558 = sphi %s510, %s510
                $region127: #{tpu_custom_call.1} parent=116 // loop_header_branch
                  %555 = sbr.rel (%p553) target = $region131
                $region128: #{tpu_custom_call.1} parent=116 // loop_body
                  %v559 = vld [vmem:[%s557] sm:%s550]
                  %560 = vst [vmem:[%s558] sm:%s550] %v559
                  %v561 = vld [vmem:[%s557 + $0xc] sm:%s550]
                  %562 = vst [vmem:[%s558 + $0x4] sm:%s550] %v561
                  %v563 = vld [vmem:[%s557 + $0x18] sm:%s550]
                  %564 = vst [vmem:[%s558 + $0x8] sm:%s550] %v563
                $region129: #{tpu_custom_call.1} parent=116 // loop_footer
                  %s556 = sadd.s32 1, %s552
                $region130: #{tpu_custom_call.1} parent=116 // loop_footer_branch
                  %551 = sbr.rel target = $region126
                $region131: #{tpu_custom_call.1} parent=116 // loop_exit
                  _
              $region117: #{tpu_custom_call.1} parent=101 // pred_fallthru
                _
            $region102: #{tpu_custom_call.1} parent=97 // pred_fallthru
              _
            // Predicated region
            $region103: #{tpu_custom_call.1} parent=97 // pred_check
              _
            $region104: #{tpu_custom_call.1} parent=97 // pred_check_branch
              %522 = sbr.rel (0) target = $region106
            $region105: #{tpu_custom_call.1} parent=97 // pred_region
              %s524 = ssub.s32 16, 1
              loop: start=0, step=1, limit=1
              $region107: #{tpu_custom_call.1} parent=105 // loop_pre_header
                _
              $region108: #{tpu_custom_call.1} parent=105 // loop_header
                %s526 = sphi 0, %s530
                %p527 = scmp.ge.s32.totalorder %s526, 1
                %s531 = sphi %s516, %s516
                %s532 = sphi %s510, %s510
              $region109: #{tpu_custom_call.1} parent=105 // loop_header_branch
                %529 = sbr.rel (%p527) target = $region113
              $region110: #{tpu_custom_call.1} parent=105 // loop_body
                %v533 = vld [vmem:[%s531] sm:%s524]
                %534 = vst [vmem:[%s532] sm:%s524] %v533
                %v535 = vld [vmem:[%s531 + $0xc] sm:%s524]
                %536 = vst [vmem:[%s532 + $0x4] sm:%s524] %v535
                %v537 = vld [vmem:[%s531 + $0x18] sm:%s524]
                %538 = vst [vmem:[%s532 + $0x8] sm:%s524] %v537
              $region111: #{tpu_custom_call.1} parent=105 // loop_footer
                %s530 = sadd.s32 1, %s526
              $region112: #{tpu_custom_call.1} parent=105 // loop_footer_branch
                %525 = sbr.rel target = $region108
              $region113: #{tpu_custom_call.1} parent=105 // loop_exit
                _
            $region106: #{tpu_custom_call.1} parent=97 // pred_fallthru
              _
          $region98: #{tpu_custom_call.1} parent=93 // pred_fallthru
            _
          %565 = vnop
        $region94: #{tpu_custom_call.1} parent=23 // pred_fallthru
          _
      $region24: #{tpu_custom_call.1} parent=5 // pred_fallthru
        _
      %p566 = scmp.le.s32.totalorder 1, %s13
      %p567 = scmp.lt.s32.totalorder %s13, 3
      %p568 = pnand %p566, %p567
      %p569 = pneg %p568
      // Predicated region
      $region132: #{tpu_custom_call.1} parent=5 // pred_check
        _
      $region133: #{tpu_custom_call.1} parent=5 // pred_check_branch
        %571 = sbr.rel (%p568) target = $region135
      $region134: #{tpu_custom_call.1} parent=5 // pred_region
        %s572 = ssub.s32 %s13, 1
        %s573 = sand.u32 %s40, 1
        %s574 = sand.u32 %s40, 1
        %s575 = smul.addr %s574, 24
        %s576 = scalar_lea.vmem [#allocation2], %s575
        // Predicated region
        $region136: #{tpu_custom_call.1} parent=134 // pred_check
          %p577 = pneg %p53
        $region137: #{tpu_custom_call.1} parent=134 // pred_check_branch
          %579 = sbr.rel (%p577) target = $region139
        $region138: #{tpu_custom_call.1} parent=134 // pred_region
          _
        $region139: #{tpu_custom_call.1} parent=134 // pred_fallthru
          _
        %s580 = sand.u32 %s72, 1
        %s581 = sand.u32 %s72, 1
        %s582 = smul.addr %s581, 12
        %s583 = scalar_lea.vmem [#allocation3], %s582
        // Predicated region
        $region140: #{tpu_custom_call.1} parent=134 // pred_check
          %p584 = pneg %p85
        $region141: #{tpu_custom_call.1} parent=134 // pred_check_branch
          %586 = sbr.rel (%p584) target = $region143
        $region142: #{tpu_custom_call.1} parent=134 // pred_region
          _
        $region143: #{tpu_custom_call.1} parent=134 // pred_fallthru
          _
        %s587 = sand.u32 %s40, 1
        %s588 = sand.u32 %s40, 1
        %s589 = smul.addr %s588, 24
        %s590 = scalar_lea.vmem [#allocation2], %s589
        %p591 = pneg %p53
        %p592 = pneg %p50
        %s593 = sand.u32 %s72, 1
        %s594 = sand.u32 %s72, 1
        %s595 = smul.addr %s594, 12
        %s596 = scalar_lea.vmem [#allocation3], %s595
        %p597 = pneg %p85
        %p598 = pneg %p82
        %s599 = smul.u32 2, %s23
        %p600 = scmp.lt.s32.totalorder %s599, 1
        %s601 = scalar_select %p600, %s599, 1
        %s602 = scalar_lea.vmem %s2, %s601
        %p603 = pneg %p111
        %p604 = pneg %p108
        %p605 = pneg %p132
        %p606 = pneg %p129
        %p607 = pneg %p160
        %p608 = pneg %p157
        %s609 = sand.u32 %s147, 1
        %s610 = scalar_lea.sflag [#allocation5], %s609
        %s611 = sand.u32 %s147, 1
        %s612 = smul.addr %s611, 16
        %s613 = scalar_lea.vmem [#allocation4], %s612
        %s614 = smul.u32 2, %s23
        %s615 = ssub.s32 3, %s614
        %p616 = scmp.lt.s32.totalorder %s615, 2
        %s617 = scalar_select %p616, %s615, 2
        %s618 = smul.u32 12, %s617
        %s619 = sadd.s32 %s23, 1
        %s620 = smul.u32 %s619, 2
        %s621 = smul.u32 2, %s23
        %p622 = scmp.lt.s32.totalorder %s621, 1
        %s623 = scalar_select %p622, %s621, 1
        %s624 = scalar_lea.vmem %s2, %s623
        %s625 = smul.u32 2, %s23
        %s626 = smul.u32 2, %s23
        %v628 = vld [vmem:[%s576] sm:$0xff]
        %v629 = vld [vmem:[%s576 + $0x8] sm:$0xff]
        %v630 = vld [vmem:[%s576 + $0x10] sm:$0x11]
        %v631 = vld [vmem:[%s583] sm:$0xf]
        %v632 = vld [vmem:[%s583 + $0x4] sm:$0xf]
        %v633 = vld [vmem:[%s583 + $0x8] sm:$0x1]
        %v637 = vunpack.c.l.b16 %v628
        %v638 = vunpack.c.h.b16 %v628
        %v639 = vunpack.c.l.b16 %v629
        %v640 = vunpack.c.h.b16 %v629
        %v641 = vunpack.c.l.b16 %v630
        %v642 = vunpack.c.h.b16 %v630
        %v643 = vpack.c.b16 %v639, %v637
        %v644 = vpack.c.b16 %v640, %v638
        %v645 = vpack.c.b16 %v641, %v641
        %v646 = vpack.c.b16 %v642, %v642
        %v652 = vunpack.c.l.b16 %v631
        %v653 = vunpack.c.l.b16 %v632
        %v654 = vunpack.c.l.b16 %v633
        %v655 = vpack.c.b16 %v653, %v652
        %v656 = vpack.c.b16 %v654, %v654
        %v658 = vld [vmem:[%s624] sm:$0x3]
        %v659 = vld [vmem:[%s3] sm:$0xf]
        %661 = vst [vmem:[#allocation1] ss:$9 sm:$0xff] %v658
        %v662 = vld [vmem:[#allocation1] sm:$0xff]
        %v663 = vld [vmem:[#allocation1 + $0x9] sm:$0xff]
        %v664 = vpack.i.b16 %v662, %v662
        %v666 = vperm.slane %v664, 0
        %v667 = vpack.i.b16 %v663, %v663
        %v669 = vperm.slane %v667, 0
        %vm670 = vcmask 1043456
        %v671 = vrot.slane %v643, 4
        %v672 = vrot.slane %v645, 4
        %v673 = vsel %vm670, %v671, %v672
        %v674 = vrot.slane %v644, 4
        %v675 = vrot.slane %v646, 4
        %v676 = vsel %vm670, %v674, %v675
        %v677 = vrot.slane %v655, 4
        %v678 = vrot.slane %v656, 4
        %v679 = vsel %vm670, %v677, %v678
        %v683 = vunpack.c.l.bf16 %v673
        %v684 = vunpack.c.l.bf16 %v676
        %v685 = vunpack.c.l.bf16 %v679
        %v686 = vunpack.c.h.bf16 %v673
        %v687 = vunpack.c.h.bf16 %v676
        %v688 = vunpack.c.h.bf16 %v679
        %v689 = vunpack.c.l.bf16 %v666
        %v690 = vunpack.c.l.bf16 %v669
        %693 = vrot.lane.b32.xlu0 %v689, 15
        %v694 = vpop.permute.xlu0 %693
        %695 = vrot.lane.b32.xlu0 %v690, 15
        %v696 = vpop.permute.xlu0 %695
        %vm697 = vcmask 121856
        %v698 = vsel %vm697, %v694, %v696
        %v702 = vmul.f32 %v683, %v694
        %v703 = vmul.f32 %v684, %v698
        %v704 = vmul.f32 %v685, %v696
        %v705 = vmul.f32 %v686, %v694
        %v706 = vmul.f32 %v687, %v698
        %v707 = vmul.f32 %v688, %v696
        %v708 = vpack.c.bf16 %v703, %v702
        %v709 = vpack.c.bf16 %v704, %v704
        %v710 = vpack.c.bf16 %v706, %v705
        %v711 = vpack.c.bf16 %v707, %v707
        %v715 = vunpack.c.l.bf16 %v671
        %v716 = vunpack.c.l.bf16 %v674
        %v717 = vunpack.c.l.bf16 %v677
        %718 = vrot.lane.b32.xlu0 %v689, 31
        %v719 = vpop.permute.xlu0 %718
        %720 = vrot.lane.b32.xlu0 %v690, 31
        %v721 = vpop.permute.xlu0 %720
        %vm722 = vcmask 252928
        %v723 = vsel %vm722, %v719, %v721
        %v727 = vmul.f32 %v715, %v719
        %v728 = vmul.f32 %v716, %v723
        %v729 = vmul.f32 %v717, %v721
        %v730 = vpack.c.bf16 %v728, %v727
        %v731 = vpack.c.bf16 %v729, %v729
        %v732 = vmul.f32 %v683, %v719
        %v733 = vmul.f32 %v684, %v723
        %v734 = vmul.f32 %v685, %v721
        %v735 = vmul.f32 %v686, %v719
        %v736 = vmul.f32 %v687, %v723
        %v737 = vmul.f32 %v688, %v721
        %v738 = vpack.c.bf16 %v733, %v732
        %v739 = vpack.c.bf16 %v734, %v734
        %v740 = vpack.c.bf16 %v736, %v735
        %v741 = vpack.c.bf16 %v737, %v737
        %v746 = vunpack.c.l.b16 %v708
        %v747 = vunpack.c.h.b16 %v708
        %v748 = vunpack.c.l.b16 %v709
        %v749 = vunpack.c.l.b16 %v710
        %v750 = vunpack.c.h.b16 %v710
        %v751 = vunpack.c.l.b16 %v711
        %v752 = vpack.c.b16 %v749, %v746
        %v753 = vpack.c.b16 %v750, %v747
        %v754 = vpack.c.b16 %v751, %v748
        %v756 = vshrl.u32 %v752, 16
        %v758 = vrot.slane %v756, 3
        %v759 = vshll.u32 %v752, 16
        %v761 = vrot.slane %v759, 4
        %v762 = vor.u32 %v758, %v761
        %v764 = vshrl.u32 %v753, 16
        %v766 = vrot.slane %v764, 3
        %v767 = vshll.u32 %v753, 16
        %v769 = vrot.slane %v767, 4
        %v770 = vor.u32 %v766, %v769
        %v772 = vshrl.u32 %v754, 16
        %v774 = vrot.slane %v772, 3
        %v775 = vshll.u32 %v754, 16
        %v777 = vrot.slane %v775, 4
        %v778 = vor.u32 %v774, %v777
        %v783 = vshrl.u32 %v643, 16
        %v785 = vrot.slane %v783, 4
        %v786 = vshll.u32 %v643, 16
        %v788 = vrot.slane %v786, 5
        %v789 = vor.u32 %v785, %v788
        %v791 = vshrl.u32 %v644, 16
        %v793 = vrot.slane %v791, 4
        %v794 = vshll.u32 %v644, 16
        %v796 = vrot.slane %v794, 5
        %v797 = vor.u32 %v793, %v796
        %v799 = vshrl.u32 %v655, 16
        %v801 = vrot.slane %v799, 4
        %v802 = vshll.u32 %v655, 16
        %v804 = vrot.slane %v802, 5
        %v805 = vor.u32 %v801, %v804
        %806 = vrot.lane.b32.xlu0 %v789, 127
        %v807 = vpop.permute.xlu0 %806
        %808 = vrot.lane.b32.xlu0 %v797, 127
        %v809 = vpop.permute.xlu0 %808
        %810 = vrot.lane.b32.xlu0 %v805, 127
        %v811 = vpop.permute.xlu0 %810
        %vm812 = vcmask 1039360
        %v813 = vsel %vm812, %v807, %v809
        %v814 = vsel %vm812, %v809, %v811
        %vm818 = vsmask.f32 3328
        %v820 = vshrl.u32 %v645, 16
        %v822 = vrot.slane %v820, 4
        %v823 = vshll.u32 %v645, 16
        %v825 = vrot.slane %v823, 5
        %v826 = vor.u32 %v822, %v825
        %v827 = vsel %vm818, %v785, %v826
        %v829 = vshrl.u32 %v646, 16
        %v831 = vrot.slane %v829, 4
        %v832 = vshll.u32 %v646, 16
        %v834 = vrot.slane %v832, 5
        %v835 = vor.u32 %v831, %v834
        %v836 = vsel %vm818, %v793, %v835
        %v838 = vshrl.u32 %v656, 16
        %v840 = vrot.slane %v838, 4
        %v841 = vshll.u32 %v656, 16
        %v843 = vrot.slane %v841, 5
        %v844 = vor.u32 %v840, %v843
        %v845 = vsel %vm818, %v801, %v844
        %846 = vrot.lane.b32.xlu0 %v827, 127
        %v847 = vpop.permute.xlu0 %846
        %848 = vrot.lane.b32.xlu0 %v836, 127
        %v849 = vpop.permute.xlu0 %848
        %850 = vrot.lane.b32.xlu0 %v845, 127
        %v851 = vpop.permute.xlu0 %850
        %v852 = vsel %vm812, %v847, %v849
        %v853 = vsel %vm812, %v849, %v851
        %v856 = vunpack.c.l.b16 %v730
        %v857 = vunpack.c.h.b16 %v730
        %v858 = vunpack.c.l.b16 %v731
        %v859 = vpack.c.b16 %v856, %v856
        %v860 = vpack.c.b16 %v857, %v857
        %v861 = vpack.c.b16 %v858, %v858
        %862 = vrot.lane.b32.xlu0 %v859, 112
        %v863 = vpop.permute.xlu0 %862
        %864 = vrot.lane.b32.xlu0 %v860, 112
        %v865 = vpop.permute.xlu0 %864
        %866 = vrot.lane.b32.xlu0 %v861, 112
        %v867 = vpop.permute.xlu0 %866
        %vm868 = vcmask 916480
        %v869 = vsel %vm868, %v863, %v865
        %v870 = vsel %vm868, %v865, %v867
        %v874 = vrot.slane %v643, 5
        %v875 = vrot.slane %v644, 5
        %v876 = vrot.slane %v655, 5
        %877 = vrot.lane.b32.xlu0 %v874, 111
        %v878 = vpop.permute.xlu0 %877
        %879 = vrot.lane.b32.xlu0 %v875, 111
        %v880 = vpop.permute.xlu0 %879
        %881 = vrot.lane.b32.xlu0 %v876, 111
        %v882 = vpop.permute.xlu0 %881
        %vm883 = vcmask 908288
        %v884 = vsel %vm883, %v878, %v880
        %v885 = vsel %vm883, %v880, %v882
        %v893 = vunpack.c.l.b16 %v738
        %v894 = vunpack.c.h.b16 %v738
        %v895 = vunpack.c.l.b16 %v739
        %v896 = vunpack.c.l.b16 %v740
        %v897 = vunpack.c.h.b16 %v740
        %v898 = vunpack.c.l.b16 %v741
        %v899 = vpack.c.b16 %v896, %v893
        %v900 = vpack.c.b16 %v897, %v894
        %v901 = vpack.c.b16 %v898, %v895
        %v903 = vshrl.u32 %v899, 16
        %v905 = vrot.slane %v903, 2
        %v906 = vshll.u32 %v899, 16
        %v908 = vrot.slane %v906, 3
        %v909 = vor.u32 %v905, %v908
        %v911 = vshrl.u32 %v900, 16
        %v913 = vrot.slane %v911, 2
        %v914 = vshll.u32 %v900, 16
        %v916 = vrot.slane %v914, 3
        %v917 = vor.u32 %v913, %v916
        %v919 = vshrl.u32 %v901, 16
        %v921 = vrot.slane %v919, 2
        %v922 = vshll.u32 %v901, 16
        %v924 = vrot.slane %v922, 3
        %v925 = vor.u32 %v921, %v924
        %926 = vrot.lane.b32.xlu0 %v909, 112
        %v927 = vpop.permute.xlu0 %926
        %928 = vrot.lane.b32.xlu0 %v917, 112
        %v929 = vpop.permute.xlu0 %928
        %930 = vrot.lane.b32.xlu0 %v925, 112
        %v931 = vpop.permute.xlu0 %930
        %v932 = vsel %vm868, %v927, %v929
        %v933 = vsel %vm868, %v929, %v931
        %v934 = vrot.slane %v783, 3
        %v935 = vrot.slane %v786, 4
        %v936 = vor.u32 %v934, %v935
        %v937 = vrot.slane %v791, 3
        %v938 = vrot.slane %v794, 4
        %v939 = vor.u32 %v937, %v938
        %v940 = vrot.slane %v799, 3
        %v941 = vrot.slane %v802, 4
        %v942 = vor.u32 %v940, %v941
        %943 = vrot.lane.b32.xlu0 %v936, 111
        %v944 = vpop.permute.xlu0 %943
        %945 = vrot.lane.b32.xlu0 %v939, 111
        %v946 = vpop.permute.xlu0 %945
        %947 = vrot.lane.b32.xlu0 %v942, 111
        %v948 = vpop.permute.xlu0 %947
        %v949 = vsel %vm883, %v944, %v946
        %v950 = vsel %vm883, %v946, %v948
        %vm954 = vsmask.f32 4352
        %v955 = vrot.slane %v820, 3
        %v956 = vrot.slane %v823, 4
        %v957 = vor.u32 %v955, %v956
        %v958 = vsel %vm954, %v934, %v957
        %v959 = vrot.slane %v829, 3
        %v960 = vrot.slane %v832, 4
        %v961 = vor.u32 %v959, %v960
        %v962 = vsel %vm954, %v937, %v961
        %v963 = vrot.slane %v838, 3
        %v964 = vrot.slane %v841, 4
        %v965 = vor.u32 %v963, %v964
        %v966 = vsel %vm954, %v940, %v965
        %967 = vrot.lane.b32.xlu0 %v958, 111
        %v968 = vpop.permute.xlu0 %967
        %969 = vrot.lane.b32.xlu0 %v962, 111
        %v970 = vpop.permute.xlu0 %969
        %971 = vrot.lane.b32.xlu0 %v966, 111
        %v972 = vpop.permute.xlu0 %971
        %v973 = vsel %vm883, %v968, %v970
        %v974 = vsel %vm883, %v970, %v972
        %vm975 = vcmask 1041408
        %vm976 = vsmask.f32 1280
        %vm977 = vmand %vm975, %vm976
        %v978 = vsel %vm977, %v762, %v813
        %v979 = vsel %vm977, %v770, %v814
        %v980 = vsel %vm977, %v778, %v811
        %vm981 = vcmask 1042432
        %v984 = vsel %vm981, %v978, %v852
        %v988 = vsel %vm981, %v979, %v853
        %v992 = vsel %vm981, %v980, %v851
        %vm994 = vcmask 1044480
        %vm995 = vmand %vm994, %vm954
        %v996 = vsel %vm995, %v984, %v869
        %v997 = vsel %vm995, %v988, %v870
        %v998 = vsel %vm995, %v992, %v867
        %vm999 = vcmask 1045504
        %v1002 = vsel %vm999, %v996, %v884
        %v1006 = vsel %vm999, %v997, %v885
        %v1010 = vsel %vm999, %v998, %v882
        %vm1012 = vcmask 1047552
        %vm1013 = vsmask.f32 7424
        %vm1014 = vmand %vm1012, %vm1013
        %v1015 = vsel %vm1014, %v1002, %v884
        %v1016 = vsel %vm1014, %v1006, %v885
        %v1017 = vsel %vm1014, %v1010, %v882
        %vm1018 = vcmask 1040384
        %v1020 = vsel %vm1018, %v884, %v932
        %v1023 = vsel %vm1018, %v885, %v933
        %v1026 = vsel %vm1018, %v882, %v931
        %vm1028 = vcmask 1042432
        %vm1029 = vsmask.f32 2304
        %vm1030 = vmand %vm1028, %vm1029
        %v1031 = vsel %vm1030, %v1020, %v949
        %v1032 = vsel %vm1030, %v1023, %v950
        %v1033 = vsel %vm1030, %v1026, %v948
        %vm1034 = vcmask 1043456
        %v1037 = vsel %vm1034, %v1031, %v973
        %v1040 = vsel %vm1034, %v1032, %v974
        %v1043 = vsel %vm1034, %v1033, %v972
        %1050 = vrot.lane.b32.xlu0 %v1015, 113
        %v1051 = vpop.permute.xlu0 %1050
        %1052 = vrot.lane.b32.xlu0 %v1016, 113
        %v1053 = vpop.permute.xlu0 %1052
        %1054 = vrot.lane.b32.xlu0 %v1017, 113
        %v1055 = vpop.permute.xlu0 %1054
        %1056 = vrot.lane.b32.xlu0 %v1037, 113
        %v1057 = vpop.permute.xlu0 %1056
        %1058 = vrot.lane.b32.xlu0 %v1040, 113
        %v1059 = vpop.permute.xlu0 %1058
        %1060 = vrot.lane.b32.xlu0 %v1043, 113
        %v1061 = vpop.permute.xlu0 %1060
        %vm1062 = vcmask 924672
        %v1063 = vsel %vm1062, %v1051, %v1053
        %v1064 = vsel %vm1062, %v1053, %v1055
        %v1065 = vsel %vm1062, %v1057, %v1059
        %v1066 = vsel %vm1062, %v1059, %v1061
        %vm1069 = vcmask 220160
        %v1071 = vsel %vm1069, %v659, 0
        %vm1073 = vcmask 1044480
        %v1074 = vsel %vm1073, 4294967295, 65535
        %v1075 = vsel %vm999, %v1074, 0
        %v1077 = vand.u32 %v1065, %v1075
        %v1080 = vand.u32 %v1066, %v1075
        %1082 = vmatpush.bf16.msra.mxu0 0
        %1083 = vmatpush.bf16.msra.mxu0 0
        %1084 = vmatpush.bf16.msra.mxu0 0
        %1085 = vmatpush.bf16.msra.mxu0 0
        %1086 = vmatpush.bf16.msra.mxu0 0
        %1087 = vmatpush.bf16.msra.mxu0 0
        %1088 = vmatpush.bf16.msra.mxu0 %v1077
        %1089 = vmatpush.bf16.msra.mxu0 %v1063
        %1090 = vmatmul.bf16.gmra.mxu0 %v1071
        %v1091 = vpop.f32.mrf.mxu0
        %v1092 = vadd.f32 0.0, %v1091
        %v1093 = vpop.f32.mrf.mxu0
        %1094 = vdwg.mxu0
        %1095 = vmatpush.bf16.msra.mxu0 0
        %1096 = vmatpush.bf16.msra.mxu0 0
        %1097 = vmatpush.bf16.msra.mxu0 0
        %1098 = vmatpush.bf16.msra.mxu0 0
        %1099 = vmatpush.bf16.msra.mxu0 0
        %1100 = vmatpush.bf16.msra.mxu0 0
        %1101 = vmatpush.bf16.msra.mxu0 %v1080
        %1102 = vmatpush.bf16.msra.mxu0 %v1064
        %1103 = vmatmul.bf16.gmra.mxu0 %v1071
        %v1104 = vpop.f32.mrf.mxu0
        %v1105 = vadd.f32 0.0, %v1104
        %v1106 = vpop.f32.mrf.mxu0
        %1107 = vdwg.mxu0
        %s1108 = scalar_lea.vmem %s3, 4
        %v1109 = vld [vmem:[%s1108] sm:$0xf]
        %v1110 = vunpack.c.l.bf16 %v643
        %v1111 = vunpack.c.l.bf16 %v644
        %v1112 = vunpack.c.l.bf16 %v655
        %v1113 = vmul.f32 %v1110, %v694
        %v1114 = vmul.f32 %v1111, %v698
        %v1115 = vmul.f32 %v1112, %v696
        %v1116 = vpack.c.bf16 %v1114, %v1113
        %v1117 = vpack.c.bf16 %v1115, %v1115
        %1118 = vst [vmem:[#allocation1] ss:$9 sm:$0xff] %v658
        %v1119 = vld [vmem:[#allocation1] sm:$0xff]
        %v1120 = vld [vmem:[#allocation1 + $0x9] sm:$0xff]
        %v1121 = vshrl.u32 %v1119, 16
        %v1122 = vpack.i.b16 %v1121, %v1121
        %v1124 = vperm.slane %v1122, 0
        %v1125 = vshrl.u32 %v1120, 16
        %v1126 = vpack.i.b16 %v1125, %v1125
        %v1128 = vperm.slane %v1126, 0
        %v1129 = vunpack.c.l.bf16 %v1124
        %v1130 = vunpack.c.l.bf16 %v1128
        %1133 = vrot.lane.b32.xlu0 %v1129, 17
        %v1134 = vpop.permute.xlu0 %1133
        %1135 = vrot.lane.b32.xlu0 %v1130, 17
        %v1136 = vpop.permute.xlu0 %1135
        %vm1137 = vcmask 138240
        %v1138 = vsel %vm1137, %v1134, %v1136
        %v1142 = vmul.f32 %v1110, %v1134
        %v1143 = vmul.f32 %v1111, %v1138
        %v1144 = vmul.f32 %v1112, %v1136
        %v1145 = vpack.c.bf16 %v1143, %v1142
        %v1146 = vpack.c.bf16 %v1144, %v1144
        %v1147 = vmul.f32 %v1110, %v719
        %v1148 = vmul.f32 %v1111, %v723
        %v1149 = vmul.f32 %v1112, %v721
        %v1150 = vpack.c.bf16 %v1148, %v1147
        %v1151 = vpack.c.bf16 %v1149, %v1149
        %1152 = vrot.lane.b32.xlu0 %v1129, 33
        %v1153 = vpop.permute.xlu0 %1152
        %1154 = vrot.lane.b32.xlu0 %v1130, 33
        %v1155 = vpop.permute.xlu0 %1154
        %vm1156 = vcmask 269312
        %v1157 = vsel %vm1156, %v1153, %v1155
        %v1161 = vmul.f32 %v1110, %v1153
        %v1162 = vmul.f32 %v1111, %v1157
        %v1163 = vmul.f32 %v1112, %v1155
        %v1164 = vpack.c.bf16 %v1162, %v1161
        %v1165 = vpack.c.bf16 %v1163, %v1163
        %1166 = vrot.lane.b32.xlu0 %v689, 47
        %v1167 = vpop.permute.xlu0 %1166
        %1168 = vrot.lane.b32.xlu0 %v690, 47
        %v1169 = vpop.permute.xlu0 %1168
        %vm1170 = vcmask 384000
        %v1171 = vsel %vm1170, %v1167, %v1169
        %v1175 = vmul.f32 %v1110, %v1167
        %v1176 = vmul.f32 %v1111, %v1171
        %v1177 = vmul.f32 %v1112, %v1169
        %v1178 = vpack.c.bf16 %v1176, %v1175
        %v1179 = vpack.c.bf16 %v1177, %v1177
        %1180 = vrot.lane.b32.xlu0 %v1129, 49
        %v1181 = vpop.permute.xlu0 %1180
        %1182 = vrot.lane.b32.xlu0 %v1130, 49
        %v1183 = vpop.permute.xlu0 %1182
        %vm1184 = vcmask 400384
        %v1185 = vsel %vm1184, %v1181, %v1183
        %v1189 = vmul.f32 %v1110, %v1181
        %v1190 = vmul.f32 %v1111, %v1185
        %v1191 = vmul.f32 %v1112, %v1183
        %v1192 = vpack.c.bf16 %v1190, %v1189
        %v1193 = vpack.c.bf16 %v1191, %v1191
        %v1196 = vunpack.c.l.b16 %v1116
        %v1197 = vunpack.c.h.b16 %v1116
        %v1198 = vunpack.c.l.b16 %v1117
        %v1199 = vpack.c.b16 %v1196, %v1196
        %v1200 = vpack.c.b16 %v1197, %v1197
        %v1201 = vpack.c.b16 %v1198, %v1198
        %v1205 = vrot.slane %v783, 6
        %v1206 = vrot.slane %v786, 7
        %v1207 = vor.u32 %v1205, %v1206
        %v1208 = vrot.slane %v791, 6
        %v1209 = vrot.slane %v794, 7
        %v1210 = vor.u32 %v1208, %v1209
        %v1211 = vrot.slane %v799, 6
        %v1212 = vrot.slane %v802, 7
        %v1213 = vor.u32 %v1211, %v1212
        %1214 = vrot.lane.b32.xlu0 %v1207, 127
        %v1215 = vpop.permute.xlu0 %1214
        %1216 = vrot.lane.b32.xlu0 %v1210, 127
        %v1217 = vpop.permute.xlu0 %1216
        %1218 = vrot.lane.b32.xlu0 %v1213, 127
        %v1219 = vpop.permute.xlu0 %1218
        %v1220 = vsel %vm812, %v1215, %v1217
        %v1221 = vsel %vm812, %v1217, %v1219
        %v1227 = vunpack.c.l.b16 %v1145
        %v1228 = vunpack.c.h.b16 %v1145
        %v1229 = vunpack.c.l.b16 %v1146
        %v1230 = vpack.c.b16 %v1227, %v1227
        %v1231 = vpack.c.b16 %v1228, %v1228
        %v1232 = vpack.c.b16 %v1229, %v1229
        %v1233 = vrot.slane %v1230, 5
        %v1234 = vrot.slane %v1231, 5
        %v1235 = vrot.slane %v1232, 5
        %1236 = vrot.lane.b32.xlu0 %v1233, 126
        %v1237 = vpop.permute.xlu0 %1236
        %1238 = vrot.lane.b32.xlu0 %v1234, 126
        %v1239 = vpop.permute.xlu0 %1238
        %1240 = vrot.lane.b32.xlu0 %v1235, 126
        %v1241 = vpop.permute.xlu0 %1240
        %vm1242 = vcmask 1031168
        %v1243 = vsel %vm1242, %v1237, %v1239
        %v1244 = vsel %vm1242, %v1239, %v1241
        %v1247 = vunpack.c.l.b16 %v1150
        %v1248 = vunpack.c.h.b16 %v1150
        %v1249 = vunpack.c.l.b16 %v1151
        %v1250 = vpack.c.b16 %v1247, %v1247
        %v1251 = vpack.c.b16 %v1248, %v1248
        %v1252 = vpack.c.b16 %v1249, %v1249
        %v1254 = vshrl.u32 %v1250, 16
        %v1256 = vrot.slane %v1254, 3
        %v1257 = vshll.u32 %v1250, 16
        %v1259 = vrot.slane %v1257, 4
        %v1260 = vor.u32 %v1256, %v1259
        %v1262 = vshrl.u32 %v1251, 16
        %v1264 = vrot.slane %v1262, 3
        %v1265 = vshll.u32 %v1251, 16
        %v1267 = vrot.slane %v1265, 4
        %v1268 = vor.u32 %v1264, %v1267
        %v1270 = vshrl.u32 %v1252, 16
        %v1272 = vrot.slane %v1270, 3
        %v1273 = vshll.u32 %v1252, 16
        %v1275 = vrot.slane %v1273, 4
        %v1276 = vor.u32 %v1272, %v1275
        %1277 = vrot.lane.b32.xlu0 %v1260, 112
        %v1278 = vpop.permute.xlu0 %1277
        %1279 = vrot.lane.b32.xlu0 %v1268, 112
        %v1280 = vpop.permute.xlu0 %1279
        %1281 = vrot.lane.b32.xlu0 %v1276, 112
        %v1282 = vpop.permute.xlu0 %1281
        %v1283 = vsel %vm868, %v1278, %v1280
        %v1284 = vsel %vm868, %v1280, %v1282
        %v1288 = vrot.slane %v643, 2
        %v1289 = vrot.slane %v644, 2
        %v1290 = vrot.slane %v655, 2
        %1291 = vrot.lane.b32.xlu0 %v1288, 111
        %v1292 = vpop.permute.xlu0 %1291
        %1293 = vrot.lane.b32.xlu0 %v1289, 111
        %v1294 = vpop.permute.xlu0 %1293
        %1295 = vrot.lane.b32.xlu0 %v1290, 111
        %v1296 = vpop.permute.xlu0 %1295
        %v1297 = vsel %vm883, %v1292, %v1294
        %v1298 = vsel %vm883, %v1294, %v1296
        %v1301 = vunpack.c.l.b16 %v1164
        %v1302 = vunpack.c.h.b16 %v1164
        %v1303 = vunpack.c.l.b16 %v1165
        %v1304 = vpack.c.b16 %v1301, %v1301
        %v1305 = vpack.c.b16 %v1302, %v1302
        %v1306 = vpack.c.b16 %v1303, %v1303
        %v1308 = vshll.u32 %v1304, 16
        %v1310 = vrot.slane %v1308, 1
        %v1312 = vshll.u32 %v1305, 16
        %v1314 = vrot.slane %v1312, 1
        %v1316 = vshll.u32 %v1306, 16
        %v1318 = vrot.slane %v1316, 1
        %v1319 = vshrl.u32 %v1304, 16
        %v1321 = vor.u32 %v1319, %v1310
        %v1322 = vshrl.u32 %v1305, 16
        %v1324 = vor.u32 %v1322, %v1314
        %v1325 = vshrl.u32 %v1306, 16
        %v1327 = vor.u32 %v1325, %v1318
        %1328 = vrot.lane.b32.xlu0 %v1310, 110
        %v1329 = vpop.permute.xlu0 %1328
        %1330 = vrot.lane.b32.xlu0 %v1314, 110
        %v1331 = vpop.permute.xlu0 %1330
        %1332 = vrot.lane.b32.xlu0 %v1318, 110
        %v1333 = vpop.permute.xlu0 %1332
        %1334 = vrot.lane.b32.xlu0 %v1321, 110
        %v1335 = vpop.permute.xlu0 %1334
        %1336 = vrot.lane.b32.xlu0 %v1324, 110
        %v1337 = vpop.permute.xlu0 %1336
        %1338 = vrot.lane.b32.xlu0 %v1327, 110
        %v1339 = vpop.permute.xlu0 %1338
        %vm1340 = vcmask 900096
        %v1341 = vsel %vm1340, %v1329, %v1331
        %v1342 = vsel %vm1340, %v1331, %v1333
        %v1343 = vsel %vm1340, %v1335, %v1337
        %v1344 = vsel %vm1340, %v1337, %v1339
        %v1350 = vunpack.c.l.b16 %v1178
        %v1351 = vunpack.c.h.b16 %v1178
        %v1352 = vunpack.c.l.b16 %v1179
        %v1353 = vpack.c.b16 %v1350, %v1350
        %v1354 = vpack.c.b16 %v1351, %v1351
        %v1355 = vpack.c.b16 %v1352, %v1352
        %v1356 = vrot.slane %v1353, 7
        %v1357 = vrot.slane %v1354, 7
        %v1358 = vrot.slane %v1355, 7
        %1359 = vrot.lane.b32.xlu0 %v1356, 96
        %v1360 = vpop.permute.xlu0 %1359
        %1361 = vrot.lane.b32.xlu0 %v1357, 96
        %v1362 = vpop.permute.xlu0 %1361
        %1363 = vrot.lane.b32.xlu0 %v1358, 96
        %v1364 = vpop.permute.xlu0 %1363
        %vm1365 = vcmask 785408
        %v1366 = vsel %vm1365, %v1360, %v1362
        %v1367 = vsel %vm1365, %v1362, %v1364
        %v1368 = vrot.slane %v783, 5
        %v1369 = vrot.slane %v786, 6
        %v1370 = vor.u32 %v1368, %v1369
        %v1371 = vrot.slane %v791, 5
        %v1372 = vrot.slane %v794, 6
        %v1373 = vor.u32 %v1371, %v1372
        %v1374 = vrot.slane %v799, 5
        %v1375 = vrot.slane %v802, 6
        %v1376 = vor.u32 %v1374, %v1375
        %1377 = vrot.lane.b32.xlu0 %v1370, 95
        %v1378 = vpop.permute.xlu0 %1377
        %1379 = vrot.lane.b32.xlu0 %v1373, 95
        %v1380 = vpop.permute.xlu0 %1379
        %1381 = vrot.lane.b32.xlu0 %v1376, 95
        %v1382 = vpop.permute.xlu0 %1381
        %vm1383 = vcmask 777216
        %v1384 = vsel %vm1383, %v1378, %v1380
        %v1385 = vsel %vm1383, %v1380, %v1382
        %v1391 = vunpack.c.l.b16 %v1192
        %v1392 = vunpack.c.h.b16 %v1192
        %v1393 = vunpack.c.l.b16 %v1193
        %v1394 = vpack.c.b16 %v1391, %v1391
        %v1395 = vpack.c.b16 %v1392, %v1392
        %v1396 = vpack.c.b16 %v1393, %v1393
        %1397 = vrot.lane.b32.xlu0 %v1394, 94
        %v1398 = vpop.permute.xlu0 %1397
        %1399 = vrot.lane.b32.xlu0 %v1395, 94
        %v1400 = vpop.permute.xlu0 %1399
        %1401 = vrot.lane.b32.xlu0 %v1396, 94
        %v1402 = vpop.permute.xlu0 %1401
        %vm1403 = vcmask 769024
        %v1404 = vsel %vm1403, %v1398, %v1400
        %v1405 = vsel %vm1403, %v1400, %v1402
        %v1406 = vsel %vm977, %v1199, %v1220
        %v1407 = vsel %vm977, %v1200, %v1221
        %v1408 = vsel %vm977, %v1201, %v1219
        %v1411 = vsel %vm981, %v1406, %v1243
        %v1415 = vsel %vm981, %v1407, %v1244
        %v1419 = vsel %vm981, %v1408, %v1241
        %v1421 = vsel %vm995, %v1411, %v1283
        %v1422 = vsel %vm995, %v1415, %v1284
        %v1423 = vsel %vm995, %v1419, %v1282
        %v1426 = vsel %vm999, %v1421, %v1297
        %v1430 = vsel %vm999, %v1422, %v1298
        %v1434 = vsel %vm999, %v1423, %v1296
        %v1436 = vsel %vm1014, %v1426, %v1341
        %v1437 = vsel %vm1014, %v1430, %v1342
        %v1438 = vsel %vm1014, %v1434, %v1333
        %v1441 = vsel %vm1018, %v1343, %v1366
        %v1445 = vsel %vm1018, %v1344, %v1367
        %v1449 = vsel %vm1018, %v1339, %v1364
        %v1451 = vsel %vm1030, %v1441, %v1384
        %v1452 = vsel %vm1030, %v1445, %v1385
        %v1453 = vsel %vm1030, %v1449, %v1382
        %v1456 = vsel %vm1034, %v1451, %v1404
        %v1459 = vsel %vm1034, %v1452, %v1405
        %v1462 = vsel %vm1034, %v1453, %v1402
        %1469 = vrot.lane.b32.xlu0 %v1436, 113
        %v1470 = vpop.permute.xlu0 %1469
        %1471 = vrot.lane.b32.xlu0 %v1437, 113
        %v1472 = vpop.permute.xlu0 %1471
        %1473 = vrot.lane.b32.xlu0 %v1438, 113
        %v1474 = vpop.permute.xlu0 %1473
        %1475 = vrot.lane.b32.xlu0 %v1456, 113
        %v1476 = vpop.permute.xlu0 %1475
        %1477 = vrot.lane.b32.xlu0 %v1459, 113
        %v1478 = vpop.permute.xlu0 %1477
        %1479 = vrot.lane.b32.xlu0 %v1462, 113
        %v1480 = vpop.permute.xlu0 %1479
        %v1481 = vsel %vm1062, %v1470, %v1472
        %v1482 = vsel %vm1062, %v1472, %v1474
        %v1483 = vsel %vm1062, %v1476, %v1478
        %v1484 = vsel %vm1062, %v1478, %v1480
        %v1488 = vsel %vm1069, %v1109, 0
        %v1491 = vand.u32 %v1483, %v1075
        %v1494 = vand.u32 %v1484, %v1075
        %1496 = vmatpush.bf16.msra.mxu0 0
        %1497 = vmatpush.bf16.msra.mxu0 0
        %1498 = vmatpush.bf16.msra.mxu0 0
        %1499 = vmatpush.bf16.msra.mxu0 0
        %1500 = vmatpush.bf16.msra.mxu0 0
        %1501 = vmatpush.bf16.msra.mxu0 0
        %1502 = vmatpush.bf16.msra.mxu0 %v1491
        %1503 = vmatpush.bf16.msra.mxu0 %v1481
        %1504 = vmatmul.bf16.gmra.mxu0 %v1488
        %v1505 = vpop.f32.mrf.mxu0
        %v1506 = vadd.f32 0.0, %v1505
        %v1507 = vpop.f32.mrf.mxu0
        %1508 = vdwg.mxu0
        %1509 = vmatpush.bf16.msra.mxu0 0
        %1510 = vmatpush.bf16.msra.mxu0 0
        %1511 = vmatpush.bf16.msra.mxu0 0
        %1512 = vmatpush.bf16.msra.mxu0 0
        %1513 = vmatpush.bf16.msra.mxu0 0
        %1514 = vmatpush.bf16.msra.mxu0 0
        %1515 = vmatpush.bf16.msra.mxu0 %v1494
        %1516 = vmatpush.bf16.msra.mxu0 %v1482
        %1517 = vmatmul.bf16.gmra.mxu0 %v1488
        %v1518 = vpop.f32.mrf.mxu0
        %v1519 = vadd.f32 0.0, %v1518
        %v1520 = vpop.f32.mrf.mxu0
        %1521 = vdwg.mxu0
        %s1522 = scalar_lea.vmem %s3, 8
        %v1523 = vld [vmem:[%s1522] sm:$0xf]
        %v1525 = vshrl.u32 %v1199, 16
        %v1527 = vrot.slane %v1525, 1
        %v1528 = vshll.u32 %v1199, 16
        %v1530 = vrot.slane %v1528, 2
        %v1531 = vor.u32 %v1527, %v1530
        %v1533 = vshrl.u32 %v1200, 16
        %v1535 = vrot.slane %v1533, 1
        %v1536 = vshll.u32 %v1200, 16
        %v1538 = vrot.slane %v1536, 2
        %v1539 = vor.u32 %v1535, %v1538
        %v1541 = vshrl.u32 %v1201, 16
        %v1543 = vrot.slane %v1541, 1
        %v1544 = vshll.u32 %v1201, 16
        %v1546 = vrot.slane %v1544, 2
        %v1547 = vor.u32 %v1543, %v1546
        %1551 = vrot.lane.b32.xlu0 %v643, 127
        %v1552 = vpop.permute.xlu0 %1551
        %1553 = vrot.lane.b32.xlu0 %v644, 127
        %v1554 = vpop.permute.xlu0 %1553
        %1555 = vrot.lane.b32.xlu0 %v655, 127
        %v1556 = vpop.permute.xlu0 %1555
        %v1557 = vsel %vm812, %v1552, %v1554
        %v1558 = vsel %vm812, %v1554, %v1556
        %v1563 = vshrl.u32 %v1230, 16
        %v1565 = vrot.slane %v1563, 6
        %v1566 = vshll.u32 %v1230, 16
        %v1568 = vrot.slane %v1566, 7
        %v1569 = vor.u32 %v1565, %v1568
        %v1571 = vshrl.u32 %v1231, 16
        %v1573 = vrot.slane %v1571, 6
        %v1574 = vshll.u32 %v1231, 16
        %v1576 = vrot.slane %v1574, 7
        %v1577 = vor.u32 %v1573, %v1576
        %v1579 = vshrl.u32 %v1232, 16
        %v1581 = vrot.slane %v1579, 6
        %v1582 = vshll.u32 %v1232, 16
        %v1584 = vrot.slane %v1582, 7
        %v1585 = vor.u32 %v1581, %v1584
        %1586 = vrot.lane.b32.xlu0 %v1569, 126
        %v1587 = vpop.permute.xlu0 %1586
        %1588 = vrot.lane.b32.xlu0 %v1577, 126
        %v1589 = vpop.permute.xlu0 %1588
        %1590 = vrot.lane.b32.xlu0 %v1585, 126
        %v1591 = vpop.permute.xlu0 %1590
        %v1592 = vsel %vm1242, %v1587, %v1589
        %v1593 = vsel %vm1242, %v1589, %v1591
        %v1594 = vrot.slane %v1250, 5
        %v1595 = vrot.slane %v1251, 5
        %v1596 = vrot.slane %v1252, 5
        %1597 = vrot.lane.b32.xlu0 %v1594, 112
        %v1598 = vpop.permute.xlu0 %1597
        %1599 = vrot.lane.b32.xlu0 %v1595, 112
        %v1600 = vpop.permute.xlu0 %1599
        %1601 = vrot.lane.b32.xlu0 %v1596, 112
        %v1602 = vpop.permute.xlu0 %1601
        %v1603 = vsel %vm868, %v1598, %v1600
        %v1604 = vsel %vm868, %v1600, %v1602
        %v1608 = vrot.slane %v1304, 2
        %v1609 = vrot.slane %v1305, 2
        %v1610 = vrot.slane %v1306, 2
        %1611 = vrot.lane.b32.xlu0 %v1608, 110
        %v1612 = vpop.permute.xlu0 %1611
        %1613 = vrot.lane.b32.xlu0 %v1609, 110
        %v1614 = vpop.permute.xlu0 %1613
        %1615 = vrot.lane.b32.xlu0 %v1610, 110
        %v1616 = vpop.permute.xlu0 %1615
        %v1617 = vsel %vm1340, %v1612, %v1614
        %v1618 = vsel %vm1340, %v1614, %v1616
        %v1623 = vshrl.u32 %v1353, 16
        %v1625 = vshll.u32 %v1353, 16
        %v1627 = vrot.slane %v1625, 1
        %v1628 = vor.u32 %v1623, %v1627
        %v1630 = vshrl.u32 %v1354, 16
        %v1632 = vshll.u32 %v1354, 16
        %v1634 = vrot.slane %v1632, 1
        %v1635 = vor.u32 %v1630, %v1634
        %v1637 = vshrl.u32 %v1355, 16
        %v1639 = vshll.u32 %v1355, 16
        %v1641 = vrot.slane %v1639, 1
        %v1642 = vor.u32 %v1637, %v1641
        %1643 = vrot.lane.b32.xlu0 %v1628, 96
        %v1644 = vpop.permute.xlu0 %1643
        %1645 = vrot.lane.b32.xlu0 %v1635, 96
        %v1646 = vpop.permute.xlu0 %1645
        %1647 = vrot.lane.b32.xlu0 %v1642, 96
        %v1648 = vpop.permute.xlu0 %1647
        %v1649 = vsel %vm1365, %v1644, %v1646
        %v1650 = vsel %vm1365, %v1646, %v1648
        %v1651 = vrot.slane %v643, 7
        %v1652 = vrot.slane %v644, 7
        %v1653 = vrot.slane %v655, 7
        %1654 = vrot.lane.b32.xlu0 %v1651, 95
        %v1655 = vpop.permute.xlu0 %1654
        %1656 = vrot.lane.b32.xlu0 %v1652, 95
        %v1657 = vpop.permute.xlu0 %1656
        %1658 = vrot.lane.b32.xlu0 %v1653, 95
        %v1659 = vpop.permute.xlu0 %1658
        %v1660 = vsel %vm1383, %v1655, %v1657
        %v1661 = vsel %vm1383, %v1657, %v1659
        %v1666 = vshrl.u32 %v1394, 16
        %v1668 = vrot.slane %v1666, 5
        %v1669 = vshll.u32 %v1394, 16
        %v1671 = vrot.slane %v1669, 6
        %v1672 = vor.u32 %v1668, %v1671
        %v1674 = vshrl.u32 %v1395, 16
        %v1676 = vrot.slane %v1674, 5
        %v1677 = vshll.u32 %v1395, 16
        %v1679 = vrot.slane %v1677, 6
        %v1680 = vor.u32 %v1676, %v1679
        %v1682 = vshrl.u32 %v1396, 16
        %v1684 = vrot.slane %v1682, 5
        %v1685 = vshll.u32 %v1396, 16
        %v1687 = vrot.slane %v1685, 6
        %v1688 = vor.u32 %v1684, %v1687
        %1689 = vrot.lane.b32.xlu0 %v1672, 94
        %v1690 = vpop.permute.xlu0 %1689
        %1691 = vrot.lane.b32.xlu0 %v1680, 94
        %v1692 = vpop.permute.xlu0 %1691
        %1693 = vrot.lane.b32.xlu0 %v1688, 94
        %v1694 = vpop.permute.xlu0 %1693
        %v1695 = vsel %vm1403, %v1690, %v1692
        %v1696 = vsel %vm1403, %v1692, %v1694
        %v1697 = vsel %vm977, %v1531, %v1557
        %v1698 = vsel %vm977, %v1539, %v1558
        %v1699 = vsel %vm977, %v1547, %v1556
        %v1702 = vsel %vm981, %v1697, %v1592
        %v1706 = vsel %vm981, %v1698, %v1593
        %v1710 = vsel %vm981, %v1699, %v1591
        %v1712 = vsel %vm995, %v1702, %v1603
        %v1713 = vsel %vm995, %v1706, %v1604
        %v1714 = vsel %vm995, %v1710, %v1602
        %v1717 = vsel %vm999, %v1712, %v949
        %v1721 = vsel %vm999, %v1713, %v950
        %v1725 = vsel %vm999, %v1714, %v948
        %v1727 = vsel %vm1014, %v1717, %v1617
        %v1728 = vsel %vm1014, %v1721, %v1618
        %v1729 = vsel %vm1014, %v1725, %v1616
        %v1732 = vsel %vm1018, %v1617, %v1649
        %v1736 = vsel %vm1018, %v1618, %v1650
        %v1740 = vsel %vm1018, %v1616, %v1648
        %v1742 = vsel %vm1030, %v1732, %v1660
        %v1743 = vsel %vm1030, %v1736, %v1661
        %v1744 = vsel %vm1030, %v1740, %v1659
        %v1747 = vsel %vm1034, %v1742, %v1695
        %v1750 = vsel %vm1034, %v1743, %v1696
        %v1753 = vsel %vm1034, %v1744, %v1694
        %1760 = vrot.lane.b32.xlu0 %v1727, 113
        %v1761 = vpop.permute.xlu0 %1760
        %1762 = vrot.lane.b32.xlu0 %v1728, 113
        %v1763 = vpop.permute.xlu0 %1762
        %1764 = vrot.lane.b32.xlu0 %v1729, 113
        %v1765 = vpop.permute.xlu0 %1764
        %1766 = vrot.lane.b32.xlu0 %v1747, 113
        %v1767 = vpop.permute.xlu0 %1766
        %1768 = vrot.lane.b32.xlu0 %v1750, 113
        %v1769 = vpop.permute.xlu0 %1768
        %1770 = vrot.lane.b32.xlu0 %v1753, 113
        %v1771 = vpop.permute.xlu0 %1770
        %v1772 = vsel %vm1062, %v1761, %v1763
        %v1773 = vsel %vm1062, %v1763, %v1765
        %v1774 = vsel %vm1062, %v1767, %v1769
        %v1775 = vsel %vm1062, %v1769, %v1771
        %v1779 = vsel %vm1069, %v1523, 0
        %v1782 = vand.u32 %v1774, %v1075
        %v1785 = vand.u32 %v1775, %v1075
        %1787 = vmatpush.bf16.msra.mxu0 0
        %1788 = vmatpush.bf16.msra.mxu0 0
        %1789 = vmatpush.bf16.msra.mxu0 0
        %1790 = vmatpush.bf16.msra.mxu0 0
        %1791 = vmatpush.bf16.msra.mxu0 0
        %1792 = vmatpush.bf16.msra.mxu0 0
        %1793 = vmatpush.bf16.msra.mxu0 %v1782
        %1794 = vmatpush.bf16.msra.mxu0 %v1772
        %1795 = vmatmul.bf16.gmra.mxu0 %v1779
        %v1796 = vpop.f32.mrf.mxu0
        %v1797 = vadd.f32 0.0, %v1796
        %v1798 = vpop.f32.mrf.mxu0
        %1799 = vdwg.mxu0
        %1800 = vmatpush.bf16.msra.mxu0 0
        %1801 = vmatpush.bf16.msra.mxu0 0
        %1802 = vmatpush.bf16.msra.mxu0 0
        %1803 = vmatpush.bf16.msra.mxu0 0
        %1804 = vmatpush.bf16.msra.mxu0 0
        %1805 = vmatpush.bf16.msra.mxu0 0
        %1806 = vmatpush.bf16.msra.mxu0 %v1785
        %1807 = vmatpush.bf16.msra.mxu0 %v1773
        %1808 = vmatmul.bf16.gmra.mxu0 %v1779
        %v1809 = vpop.f32.mrf.mxu0
        %v1810 = vadd.f32 0.0, %v1809
        %v1811 = vpop.f32.mrf.mxu0
        %1812 = vdwg.mxu0
        %v1813 = vxor.u32 %v1506, 2147483648
        %v1814 = vxor.u32 %v1519, 2147483648
        %v1815 = vmul.f32 %v1813, 1.442695
        %v1816 = vpow.pop %v1815
        %v1817 = vmul.f32 %v1814, 1.442695
        %v1818 = vpow.pop %v1817
        %v1819 = vadd.f32 %v1816, 1.0
        %v1820 = vadd.f32 %v1818, 1.0
        %v1821 = vrcp.pop %v1819
        %v1822 = vmul.f32 %v1819, %v1821
        %v1823 = vsub.f32 1.0, %v1822
        %v1824 = vmul.f32 %v1821, %v1823
        %v1825 = vadd.f32 %v1821, %v1824
        %vm1826 = vweird.f32 %v1819
        %vm1827 = vweird.f32 %v1821
        %vm1828 = vmor %vm1826, %vm1827
        %v1829 = vsel %vm1828, %v1821, %v1825
        %v1830 = vand.u32 2147483647, %v1819
        %vm1831 = vcmp.eq.f32.partialorder %v1830, 8.507059e+37
        %v1832 = vand.u32 %v1819, 2147483648
        %v1833 = vor.u32 1.1754944e-38, %v1832
        %v1834 = vsel %vm1831, %v1833, %v1829
        %v1835 = vmul.f32 1.0, %v1834
        %v1836 = vrcp.pop %v1820
        %v1837 = vmul.f32 %v1820, %v1836
        %v1838 = vsub.f32 1.0, %v1837
        %v1839 = vmul.f32 %v1836, %v1838
        %v1840 = vadd.f32 %v1836, %v1839
        %vm1841 = vweird.f32 %v1820
        %vm1842 = vweird.f32 %v1836
        %vm1843 = vmor %vm1841, %vm1842
        %v1844 = vsel %vm1843, %v1836, %v1840
        %v1845 = vand.u32 2147483647, %v1820
        %vm1846 = vcmp.eq.f32.partialorder %v1845, 8.507059e+37
        %v1847 = vand.u32 %v1820, 2147483648
        %v1848 = vor.u32 1.1754944e-38, %v1847
        %v1849 = vsel %vm1846, %v1848, %v1844
        %v1850 = vmul.f32 1.0, %v1849
        %v1851 = vadd.f32 %v1835, 1.0
        %v1852 = vadd.f32 %v1850, 1.0
        %v1853 = vmul.f32 %v1092, %v1851
        %v1854 = vmul.f32 %v1105, %v1852
        %v1855 = vadd.f32 %v1853, %v1797
        %v1856 = vadd.f32 %v1854, %v1810
        %1857 = vst [vmem:[%s613] sm:$0xff] %v1855
        %1858 = vst [vmem:[%s613 + $0x8] sm:$0xff] %v1856
        %s1859 = sand.u32 %s147, 1
        %s1860 = scalar_lea.sflag [#allocation5], %s1859
        %s1861 = sand.u32 %s147, 1
        %s1862 = smul.addr %s1861, 16
        %s1863 = scalar_lea.vmem [#allocation4], %s1862
        // Predicated region
        $region144: #{tpu_custom_call.1} parent=134 // pred_check
          %p1864 = pneg %p157
        $region145: #{tpu_custom_call.1} parent=134 // pred_check_branch
          %1866 = sbr.rel (%p1864) target = $region147
        $region146: #{tpu_custom_call.1} parent=134 // pred_region
          %s1867 = smul.u32 2, %s23
          %1869 = vsyncadd %s1860, 0
          %s1870 = smul.addr %s22, 2
          %s1871 = sadd.s32 %s1867, %s1870
          %s1872 = smul.addr %s1871, 8
          %s1873 = scalar_lea.hbm %s4, %s1872
          %s1875 = sshll.u32 %s1863, 4
          %s1876 = int_to_ptr.vmem [resolvable:$true] %s1875
          %s1877 = sshll.u32 %s1873, 4
          %s1878 = int_to_ptr.hbm [resolvable:$true] %s1877
          %1880 = dma.vmem_to_hbm [thread:$0]  %s1876, 256, %s1878, %s1860
        $region147: #{tpu_custom_call.1} parent=134 // pred_fallthru
          _
      $region135: #{tpu_custom_call.1} parent=5 // pred_fallthru
        _
      %p1881 = scmp.le.s32.totalorder 2, %s13
      // Predicated region
      $region148: #{tpu_custom_call.1} parent=5 // pred_check
        %p1882 = pneg %p1881
      $region149: #{tpu_custom_call.1} parent=5 // pred_check_branch
        %1884 = sbr.rel (%p1882) target = $region151
      $region150: #{tpu_custom_call.1} parent=5 // pred_region
        %s1885 = ssub.s32 %s13, 2
        // Predicated region
        $region152: #{tpu_custom_call.1} parent=150 // pred_check
          %p1886 = pneg %p163
        $region153: #{tpu_custom_call.1} parent=150 // pred_check_branch
          %1888 = sbr.rel (%p1886) target = $region155
        $region154: #{tpu_custom_call.1} parent=150 // pred_region
          %s1889 = sand.u32 %s148, 1
          %s1890 = scalar_lea.sflag [#allocation5], %s1889
          %s1891 = sand.u32 %s148, 1
          %s1892 = smul.addr %s1891, 16
          %s1893 = scalar_lea.vmem [#allocation4], %s1892
          %1895 = dma.done %s1890, 256
        $region155: #{tpu_custom_call.1} parent=150 // pred_fallthru
          _
      $region151: #{tpu_custom_call.1} parent=5 // pred_fallthru
        _
    $region6: #{tpu_custom_call.1} parent=1 // loop_footer
      %s17 = sadd.s32 1, %s13
    $region7: #{tpu_custom_call.1} parent=1 // loop_footer_branch
      %12 = sbr.rel target = $region3
    $region8: #{tpu_custom_call.1} parent=1 // loop_exit
      _
    %1896 = vsyncpa [#allocation5], 1
    %s1897 = scalar_lea.sflag [#allocation5], 1
    %1898 = vsyncpa %s1897, 1

</llo_original>
